<compile_context>
chip_gen: v6e
topology: v6e:2x2x1
jax: 0.10.0
libtpu: 0.0.40
codegen_flags: <defaults>
</compile_context>

<pallas_src>
import functools

import jax
import jax.numpy as jnp
from jax.experimental import pallas as pl
from jax.experimental.pallas import tpu as pltpu

LEAKY_SLOPE = 0.2
BN_EPS = 1e-5


# ---------------------------------------------------------------------------
# Pass 1: implicit-im2col conv (MXU, f32 accumulation) + per-row BN partial sums
# ---------------------------------------------------------------------------
def _make_conv_stats_kernel(ks, stride, wo):
    """Kernel over grid (n, ho): one conv output row per step.

    refs = (x_row_kh0, ..., x_row_kh{ks-1}, w_taps, y_out, stats_out)
      x_row_kh : (Wp, Cin)        bf16   padded input row at h = ho*stride + kh
      w_taps   : (ks*ks, Cin, Cout) bf16
      y_out    : (Wo, Cout)       bf16   conv output row (stats use the f32 accumulator)
      stats_out: (2, Cout)        f32    [sum(y), sum(y*y)] for this row
    """

    def kernel(*refs):
        x_refs = refs[:ks]
        w_ref = refs[ks]
        y_ref = refs[ks + 1]
        stats_ref = refs[ks + 2]

        acc = None
        for kh in range(ks):
            row = x_refs[kh][...]                         # (Wp, Cin) bf16
            for kw in range(ks):
                stop = kw + (wo - 1) * stride + 1
                # Static (strided when stride>1) window along W.
                # TODO(synk): stride>1 value-strided slice path is correctness-first;
                # validate lowering before using strided ConvBlocks on TPU.
                lhs = jax.lax.slice(row, (kw, 0), (stop, row.shape[1]), (stride, 1))
                part = jnp.dot(lhs, w_ref[kh * ks + kw],
                               preferred_element_type=jnp.float32)
                acc = part if acc is None else acc + part

        y_ref[...] = acc.astype(y_ref.dtype)              # bf16 inter-pass storage
        # Two direct row stores (no concatenate -> no sublane relayout).
        stats_ref[0:1, :] = jnp.sum(acc, axis=0, keepdims=True)
        stats_ref[1:2, :] = jnp.sum(acc * acc, axis=0, keepdims=True)

    return kernel


# ---------------------------------------------------------------------------
# Pass 2: fused BatchNorm affine (precomputed per-channel scale/shift) + LeakyReLU(0.2)
# ---------------------------------------------------------------------------
def _bn_act_kernel(y_ref, scale_ref, shift_ref, o_ref):
    y = y_ref[...].astype(jnp.float32)                    # (th, Wo, Cout)
    yhat = y * scale_ref[...] + shift_ref[...]            # (1, 1, Cout) broadcasts
    o_ref[...] = jnp.where(yhat >= 0, yhat, LEAKY_SLOPE * yhat)


def conv_block_forward(x_nchw, w_oihw, gamma, beta, *, ks, stride, out_layout="NCHW"):
    """ConvBlock forward: zero-pad conv (bias=False) -> BatchNorm2d (batch stats) -> LeakyReLU."""
    N, Cin, H, W = x_nchw.shape
    Cout = w_oihw.shape[0]
    pad = ks // 2 // stride                                # module default
    Ho = (H + 2 * pad - ks) // stride + 1
    Wo = (W + 2 * pad - ks) // stride + 1
    Hp, Wp = H + 2 * pad, W + 2 * pad
    M = N * Ho * Wo

    # --- XLA glue: a single pass over the input (NCHW -> padded NHWC, bf16). ---
    x_nhwc = jnp.transpose(x_nchw, (0, 2, 3, 1)).astype(jnp.bfloat16)
    x_pad = jnp.pad(x_nhwc, ((0, 0), (pad, pad), (pad, pad), (0, 0)))

    # Conv weight (Cout, Cin, kh, kw) -> (ks*ks, Cin, Cout) bf16, no channel padding.
    # TODO(synk): large-channel layers on v6e/v7x usually already have 128/256-multiple
    # Cin/Cout; add explicit 256-alignment only for ragged channel counts.
    w_taps = (jnp.transpose(w_oihw, (2, 3, 1, 0))
              .reshape(ks * ks, Cin, Cout).astype(jnp.bfloat16))

    # --- pass 1: conv + per-row BN partial sums; grid (N, Ho), fully parallel ---
    x_specs = []
    for kh in range(ks):
        x_specs.append(
            pl.BlockSpec((None, None, Wp, Cin),
                         lambda n, ho, _kh=kh: (n, ho * stride + _kh, 0, 0)))
    w_spec = pl.BlockSpec((ks * ks, Cin, Cout), lambda n, ho: (0, 0, 0))
    # TODO(synk): single-buffer this constant weight block via pipeline_mode=pl.Buffered(1)
    # once validated on the target jax build; it is conservatively counted twice below.

    xblk = Wp * Cin * 2
    wblk = ks * ks * Cin * Cout * 2
    yblk = Wo * Cout * 2
    sblk = 2 * Cout * 4
    est1 = 2 * (ks * xblk + wblk + yblk + sblk)            # double-buffered blocks
    vmem1 = int(min(max(4 * est1, 8 << 20), 48 << 20))     # stay < v7x 64 MiB physical VMEM

    y, part = pl.pallas_call(
        _make_conv_stats_kernel(ks, stride, Wo),
        grid=(N, Ho),
        in_specs=x_specs + [w_spec],
        out_specs=(
            pl.BlockSpec((None, None, Wo, Cout), lambda n, ho: (n, ho, 0, 0)),
            pl.BlockSpec((None, None, 2, Cout), lambda n, ho: (n, ho, 0, 0)),
        ),
        out_shape=(
            jax.ShapeDtypeStruct((N, Ho, Wo, Cout), jnp.bfloat16),   # bf16 intermediate
            jax.ShapeDtypeStruct((N, Ho, 2, Cout), jnp.float32),
        ),
        compiler_params=pltpu.CompilerParams(
            dimension_semantics=("parallel", "parallel"),
            vmem_limit_bytes=vmem1),
    )(*([x_pad] * ks), w_taps)

    # --- tiny cross-row reduction + per-channel BN scale/shift (plain JAX, O(Cout)) ---
    stats = jnp.sum(part, axis=(0, 1))                     # (2, Cout) f32
    gamma32 = gamma.astype(jnp.float32)
    beta32 = beta.astype(jnp.float32)
    mean = stats[0] / M
    # TODO(synk): switch to shifted / Welford-style partials if E[y^2]-E[y]^2 cancellation
    # ever matters beyond ~1e-3 for very large M.
    var = jnp.maximum(stats[1] / M - mean * mean, 0.0)
    inv_std = jax.lax.rsqrt(var + BN_EPS)
    scale = (gamma32 * inv_std).reshape(1, 1, Cout)
    shift = (beta32 - mean * gamma32 * inv_std).reshape(1, 1, Cout)

    # --- pass 2: BN affine + LeakyReLU over large NHWC tiles (pure streaming) ---
    row_bytes = Wo * Cout * (2 + 4)                        # bf16 in + f32 out per ho row
    th2 = max(1, min(Ho, (2 << 20) // max(1, row_bytes)))  # ~2 MiB tiles amortize step cost
    n_hb = pl.cdiv(Ho, th2)
    est2 = 2 * (th2 * row_bytes + 2 * Cout * 4)
    vmem2 = int(min(max(4 * est2, 8 << 20), 48 << 20))

    out_nhwc = pl.pallas_call(
        _bn_act_kernel,
        grid=(N, n_hb),
        in_specs=[
            pl.BlockSpec((None, th2, Wo, Cout), lambda n, hb: (n, hb, 0, 0)),
            pl.BlockSpec((1, 1, Cout), lambda n, hb: (0, 0, 0)),
            pl.BlockSpec((1, 1, Cout), lambda n, hb: (0, 0, 0)),
        ],
        out_specs=pl.BlockSpec((None, th2, Wo, Cout), lambda n, hb: (n, hb, 0, 0)),
        out_shape=jax.ShapeDtypeStruct((N, Ho, Wo, Cout), jnp.float32),
        compiler_params=pltpu.CompilerParams(
            dimension_semantics=("parallel", "parallel"),
            vmem_limit_bytes=vmem2),
    )(y, scale, shift)

    if out_layout == "NHWC":
        return out_nhwc
    # Module contract is NCHW; this transpose of the true-size output is the only
    # remaining XLA epilogue (no padded channels, no slice).
    return jnp.transpose(out_nhwc, (0, 3, 1, 2))


def reference_forward(x_nchw, w_oihw, gamma, beta, *, ks, stride):
    """Pure-JAX reference. Conv operands are rounded to bf16 and the conv activation is
    rounded to bf16 before normalization, mirroring the kernel's MXU input precision and
    bf16 inter-pass storage (accumulation and statistics stay f32)."""
    pad = ks // 2 // stride
    xb = x_nchw.astype(jnp.bfloat16).astype(jnp.float32)
    wb = w_oihw.astype(jnp.bfloat16).astype(jnp.float32)
    y = jax.lax.conv_general_dilated(
        xb, wb, window_strides=(stride, stride),
        padding=((pad, pad), (pad, pad)),
        dimension_numbers=("NCHW", "OIHW", "NCHW"),
        preferred_element_type=jnp.float32)
    mean = jnp.mean(y, axis=(0, 2, 3), keepdims=True)
    var = jnp.mean((y - mean) ** 2, axis=(0, 2, 3), keepdims=True)
    y = y.astype(jnp.bfloat16).astype(jnp.float32)          # mirror bf16 inter-pass storage
    y = (y - mean) * jax.lax.rsqrt(var + BN_EPS)
    y = y * gamma.reshape(1, -1, 1, 1) + beta.reshape(1, -1, 1, 1)
    return jnp.where(y >= 0, y, LEAKY_SLOPE * y)


if __name__ == "__main__":
    # ConvBlock(ni=4, no=8, ks=3, stride=1) with defaults (Zero pad, batchnorm, leakyrelu)
    N, Cin, H, W = 2, 4, 16, 16
    Cout, ks, stride = 8, 3, 1

    key = jax.random.PRNGKey(0)
    kx, kw = jax.random.split(key)
    x = jax.random.normal(kx, (N, Cin, H, W), dtype=jnp.float32)
    # Conv2d weight (out, in, kh, kw), bias=False. Deterministic synthetic init.
    fan_in = Cin * ks * ks
    bound = 1.0 / (fan_in ** 0.5)
    w = jax.random.uniform(kw, (Cout, Cin, ks, ks), minval=-bound, maxval=bound,
                           dtype=jnp.float32)
    # BatchNorm2d fresh init: gamma=1, beta=0.
    gamma = jnp.ones((Cout,), dtype=jnp.float32)
    beta = jnp.zeros((Cout,), dtype=jnp.float32)

    fwd = jax.jit(functools.partial(conv_block_forward, ks=ks, stride=stride))
    out = jax.block_until_ready(fwd(x, w, gamma, beta))

    ref = reference_forward(x, w, gamma, beta, ks=ks, stride=stride)
    assert out.shape == (N, Cout, H, W)
    max_err = float(jnp.max(jnp.abs(out - ref)))
    # Tolerance accounts for rare one-ulp bf16 rounding disagreements of the inter-pass
    # activation (kernel MXU vs XLA conv accumulation order) scaled by the BN inv-std.
    assert jnp.allclose(out, ref, atol=2e-2, rtol=1e-2), max_err

    print("KERNEL_OK")
</pallas_src>

<mosaic_0001>
module attributes {stable_mosaic.version = 11 : i64} {
  func.func @kernel(%arg0: i32, %arg1: i32, %arg2: memref<1x1x18x4xbf16, #tpu.memory_space<vmem>>, %arg3: memref<1x1x18x4xbf16, #tpu.memory_space<vmem>>, %arg4: memref<1x1x18x4xbf16, #tpu.memory_space<vmem>>, %arg5: memref<9x4x8xbf16, #tpu.memory_space<vmem>>, %arg6: memref<1x1x16x8xbf16, #tpu.memory_space<vmem>>, %arg7: memref<1x1x2x8xf32, #tpu.memory_space<vmem>>) attributes {dimension_semantics = [#tpu.dimension_semantics<parallel>, #tpu.dimension_semantics<parallel>], iteration_bounds = array<i64: 2, 16>, scalar_prefetch = 0 : i64, scratch_operands = 0 : i64, tpu.core_type = #tpu.core_type<tc>, window_params = [{transform_indices = @transform_0, window_bounds = array<i64: 1, 1, 18, 4>}, {transform_indices = @transform_1, window_bounds = array<i64: 1, 1, 18, 4>}, {transform_indices = @transform_2, window_bounds = array<i64: 1, 1, 18, 4>}, {pipeline_mode = #tpu.pipeline_mode<synchronous>, transform_indices = @transform_3, window_bounds = array<i64: 9, 4, 8>}, {transform_indices = @transform_4, window_bounds = array<i64: 1, 1, 16, 8>}, {transform_indices = @transform_5, window_bounds = array<i64: 1, 1, 2, 8>}]} {
    %c0 = arith.constant 0 : index
    %c0_0 = arith.constant 0 : index
    %c0_1 = arith.constant 0 : index
    %c0_2 = arith.constant 0 : index
    %0 = vector.load %arg2[%c0, %c0_0, %c0_1, %c0_2] : memref<1x1x18x4xbf16, #tpu.memory_space<vmem>>, vector<1x1x18x4xbf16>
    %1 = vector.shape_cast %0 : vector<1x1x18x4xbf16> to vector<18x4xbf16>
    %2 = vector.extract_strided_slice %1 {offsets = [0, 0], sizes = [16, 4], strides = [1, 1]} : vector<18x4xbf16> to vector<16x4xbf16>
    %c0_3 = arith.constant 0 : index
    %c0_4 = arith.constant 0 : index
    %c0_5 = arith.constant 0 : index
    %3 = vector.load %arg5[%c0_3, %c0_4, %c0_5] : memref<9x4x8xbf16, #tpu.memory_space<vmem>>, vector<1x4x8xbf16>
    %4 = vector.shape_cast %3 : vector<1x4x8xbf16> to vector<4x8xbf16>
    %cst = arith.constant dense<0.000000e+00> : vector<16x8xf32>
    %5 = tpu.matmul %2, %4, %cst {dimension_numbers = #tpu.dot_dimension_numbers<[1], [0], [0], [1], [0, 0, 1, 1], [], []>} : vector<16x4xbf16>, vector<4x8xbf16>, vector<16x8xf32> -> vector<16x8xf32>
    %6 = vector.extract_strided_slice %1 {offsets = [1, 0], sizes = [16, 4], strides = [1, 1]} : vector<18x4xbf16> to vector<16x4xbf16>
    %c1 = arith.constant 1 : index
    %c0_6 = arith.constant 0 : index
    %c0_7 = arith.constant 0 : index
    %7 = vector.load %arg5[%c1, %c0_6, %c0_7] : memref<9x4x8xbf16, #tpu.memory_space<vmem>>, vector<1x4x8xbf16>
    %8 = vector.shape_cast %7 : vector<1x4x8xbf16> to vector<4x8xbf16>
    %cst_8 = arith.constant dense<0.000000e+00> : vector<16x8xf32>
    %9 = tpu.matmul %6, %8, %cst_8 {dimension_numbers = #tpu.dot_dimension_numbers<[1], [0], [0], [1], [0, 0, 1, 1], [], []>} : vector<16x4xbf16>, vector<4x8xbf16>, vector<16x8xf32> -> vector<16x8xf32>
    %10 = arith.addf %5, %9 : vector<16x8xf32>
    %11 = vector.extract_strided_slice %1 {offsets = [2, 0], sizes = [16, 4], strides = [1, 1]} : vector<18x4xbf16> to vector<16x4xbf16>
    %c2 = arith.constant 2 : index
    %c0_9 = arith.constant 0 : index
    %c0_10 = arith.constant 0 : index
    %12 = vector.load %arg5[%c2, %c0_9, %c0_10] : memref<9x4x8xbf16, #tpu.memory_space<vmem>>, vector<1x4x8xbf16>
    %13 = vector.shape_cast %12 : vector<1x4x8xbf16> to vector<4x8xbf16>
    %cst_11 = arith.constant dense<0.000000e+00> : vector<16x8xf32>
    %14 = tpu.matmul %11, %13, %cst_11 {dimension_numbers = #tpu.dot_dimension_numbers<[1], [0], [0], [1], [0, 0, 1, 1], [], []>} : vector<16x4xbf16>, vector<4x8xbf16>, vector<16x8xf32> -> vector<16x8xf32>
    %15 = arith.addf %10, %14 : vector<16x8xf32>
    %c0_12 = arith.constant 0 : index
    %c0_13 = arith.constant 0 : index
    %c0_14 = arith.constant 0 : index
    %c0_15 = arith.constant 0 : index
    %16 = vector.load %arg3[%c0_12, %c0_13, %c0_14, %c0_15] : memref<1x1x18x4xbf16, #tpu.memory_space<vmem>>, vector<1x1x18x4xbf16>
    %17 = vector.shape_cast %16 : vector<1x1x18x4xbf16> to vector<18x4xbf16>
    %18 = vector.extract_strided_slice %17 {offsets = [0, 0], sizes = [16, 4], strides = [1, 1]} : vector<18x4xbf16> to vector<16x4xbf16>
    %c3 = arith.constant 3 : index
    %c0_16 = arith.constant 0 : index
    %c0_17 = arith.constant 0 : index
    %19 = vector.load %arg5[%c3, %c0_16, %c0_17] : memref<9x4x8xbf16, #tpu.memory_space<vmem>>, vector<1x4x8xbf16>
    %20 = vector.shape_cast %19 : vector<1x4x8xbf16> to vector<4x8xbf16>
    %cst_18 = arith.constant dense<0.000000e+00> : vector<16x8xf32>
    %21 = tpu.matmul %18, %20, %cst_18 {dimension_numbers = #tpu.dot_dimension_numbers<[1], [0], [0], [1], [0, 0, 1, 1], [], []>} : vector<16x4xbf16>, vector<4x8xbf16>, vector<16x8xf32> -> vector<16x8xf32>
    %22 = arith.addf %15, %21 : vector<16x8xf32>
    %23 = vector.extract_strided_slice %17 {offsets = [1, 0], sizes = [16, 4], strides = [1, 1]} : vector<18x4xbf16> to vector<16x4xbf16>
    %c4 = arith.constant 4 : index
    %c0_19 = arith.constant 0 : index
    %c0_20 = arith.constant 0 : index
    %24 = vector.load %arg5[%c4, %c0_19, %c0_20] : memref<9x4x8xbf16, #tpu.memory_space<vmem>>, vector<1x4x8xbf16>
    %25 = vector.shape_cast %24 : vector<1x4x8xbf16> to vector<4x8xbf16>
    %cst_21 = arith.constant dense<0.000000e+00> : vector<16x8xf32>
    %26 = tpu.matmul %23, %25, %cst_21 {dimension_numbers = #tpu.dot_dimension_numbers<[1], [0], [0], [1], [0, 0, 1, 1], [], []>} : vector<16x4xbf16>, vector<4x8xbf16>, vector<16x8xf32> -> vector<16x8xf32>
    %27 = arith.addf %22, %26 : vector<16x8xf32>
    %28 = vector.extract_strided_slice %17 {offsets = [2, 0], sizes = [16, 4], strides = [1, 1]} : vector<18x4xbf16> to vector<16x4xbf16>
    %c5 = arith.constant 5 : index
    %c0_22 = arith.constant 0 : index
    %c0_23 = arith.constant 0 : index
    %29 = vector.load %arg5[%c5, %c0_22, %c0_23] : memref<9x4x8xbf16, #tpu.memory_space<vmem>>, vector<1x4x8xbf16>
    %30 = vector.shape_cast %29 : vector<1x4x8xbf16> to vector<4x8xbf16>
    %cst_24 = arith.constant dense<0.000000e+00> : vector<16x8xf32>
    %31 = tpu.matmul %28, %30, %cst_24 {dimension_numbers = #tpu.dot_dimension_numbers<[1], [0], [0], [1], [0, 0, 1, 1], [], []>} : vector<16x4xbf16>, vector<4x8xbf16>, vector<16x8xf32> -> vector<16x8xf32>
    %32 = arith.addf %27, %31 : vector<16x8xf32>
    %c0_25 = arith.constant 0 : index
    %c0_26 = arith.constant 0 : index
    %c0_27 = arith.constant 0 : index
    %c0_28 = arith.constant 0 : index
    %33 = vector.load %arg4[%c0_25, %c0_26, %c0_27, %c0_28] : memref<1x1x18x4xbf16, #tpu.memory_space<vmem>>, vector<1x1x18x4xbf16>
    %34 = vector.shape_cast %33 : vector<1x1x18x4xbf16> to vector<18x4xbf16>
    %35 = vector.extract_strided_slice %34 {offsets = [0, 0], sizes = [16, 4], strides = [1, 1]} : vector<18x4xbf16> to vector<16x4xbf16>
    %c6 = arith.constant 6 : index
    %c0_29 = arith.constant 0 : index
    %c0_30 = arith.constant 0 : index
    %36 = vector.load %arg5[%c6, %c0_29, %c0_30] : memref<9x4x8xbf16, #tpu.memory_space<vmem>>, vector<1x4x8xbf16>
    %37 = vector.shape_cast %36 : vector<1x4x8xbf16> to vector<4x8xbf16>
    %cst_31 = arith.constant dense<0.000000e+00> : vector<16x8xf32>
    %38 = tpu.matmul %35, %37, %cst_31 {dimension_numbers = #tpu.dot_dimension_numbers<[1], [0], [0], [1], [0, 0, 1, 1], [], []>} : vector<16x4xbf16>, vector<4x8xbf16>, vector<16x8xf32> -> vector<16x8xf32>
    %39 = arith.addf %32, %38 : vector<16x8xf32>
    %40 = vector.extract_strided_slice %34 {offsets = [1, 0], sizes = [16, 4], strides = [1, 1]} : vector<18x4xbf16> to vector<16x4xbf16>
    %c7 = arith.constant 7 : index
    %c0_32 = arith.constant 0 : index
    %c0_33 = arith.constant 0 : index
    %41 = vector.load %arg5[%c7, %c0_32, %c0_33] : memref<9x4x8xbf16, #tpu.memory_space<vmem>>, vector<1x4x8xbf16>
    %42 = vector.shape_cast %41 : vector<1x4x8xbf16> to vector<4x8xbf16>
    %cst_34 = arith.constant dense<0.000000e+00> : vector<16x8xf32>
    %43 = tpu.matmul %40, %42, %cst_34 {dimension_numbers = #tpu.dot_dimension_numbers<[1], [0], [0], [1], [0, 0, 1, 1], [], []>} : vector<16x4xbf16>, vector<4x8xbf16>, vector<16x8xf32> -> vector<16x8xf32>
    %44 = arith.addf %39, %43 : vector<16x8xf32>
    %45 = vector.extract_strided_slice %34 {offsets = [2, 0], sizes = [16, 4], strides = [1, 1]} : vector<18x4xbf16> to vector<16x4xbf16>
    %c8 = arith.constant 8 : index
    %c0_35 = arith.constant 0 : index
    %c0_36 = arith.constant 0 : index
    %46 = vector.load %arg5[%c8, %c0_35, %c0_36] : memref<9x4x8xbf16, #tpu.memory_space<vmem>>, vector<1x4x8xbf16>
    %47 = vector.shape_cast %46 : vector<1x4x8xbf16> to vector<4x8xbf16>
    %cst_37 = arith.constant dense<0.000000e+00> : vector<16x8xf32>
    %48 = tpu.matmul %45, %47, %cst_37 {dimension_numbers = #tpu.dot_dimension_numbers<[1], [0], [0], [1], [0, 0, 1, 1], [], []>} : vector<16x4xbf16>, vector<4x8xbf16>, vector<16x8xf32> -> vector<16x8xf32>
    %49 = arith.addf %44, %48 : vector<16x8xf32>
    %50 = arith.truncf %49 : vector<16x8xf32> to vector<16x8xbf16>
    %c0_38 = arith.constant 0 : index
    %c0_39 = arith.constant 0 : index
    %c0_40 = arith.constant 0 : index
    %c0_41 = arith.constant 0 : index
    %51 = vector.load %arg6[%c0_38, %c0_39, %c0_40, %c0_41] : memref<1x1x16x8xbf16, #tpu.memory_space<vmem>>, vector<1x1x16x8xbf16>
    %52 = vector.shape_cast %51 : vector<1x1x16x8xbf16> to vector<16x8xbf16>
    %53 = vector.shape_cast %50 : vector<16x8xbf16> to vector<1x1x16x8xbf16>
    tpu.vector_store %arg6[%c0_38, %c0_39, %c0_40, %c0_41], %53 {strides = array<i32>} : memref<1x1x16x8xbf16, #tpu.memory_space<vmem>>, vector<1x1x16x8xbf16>,
    %cst_42 = arith.constant dense<0.000000e+00> : vector<8xf32>
    %54 = vector.multi_reduction <add>, %49, %cst_42 [0] : vector<16x8xf32> to vector<8xf32>
    %55 = vector.shape_cast %54 : vector<8xf32> to vector<1x8xf32>
    %c0_43 = arith.constant 0 : index
    %c0_44 = arith.constant 0 : index
    %c0_45 = arith.constant 0 : index
    %c0_46 = arith.constant 0 : index
    %56 = vector.load %arg7[%c0_43, %c0_44, %c0_45, %c0_46] : memref<1x1x2x8xf32, #tpu.memory_space<vmem>>, vector<1x1x1x8xf32>
    %57 = vector.shape_cast %56 : vector<1x1x1x8xf32> to vector<1x8xf32>
    %58 = vector.shape_cast %55 : vector<1x8xf32> to vector<1x1x1x8xf32>
    tpu.vector_store %arg7[%c0_43, %c0_44, %c0_45, %c0_46], %58 {strides = array<i32>} : memref<1x1x2x8xf32, #tpu.memory_space<vmem>>, vector<1x1x1x8xf32>,
    %59 = arith.mulf %49, %49 : vector<16x8xf32>
    %cst_47 = arith.constant dense<0.000000e+00> : vector<8xf32>
    %60 = vector.multi_reduction <add>, %59, %cst_47 [0] : vector<16x8xf32> to vector<8xf32>
    %61 = vector.shape_cast %60 : vector<8xf32> to vector<1x8xf32>
    %c0_48 = arith.constant 0 : index
    %c0_49 = arith.constant 0 : index
    %c1_50 = arith.constant 1 : index
    %c0_51 = arith.constant 0 : index
    %62 = vector.load %arg7[%c0_48, %c0_49, %c1_50, %c0_51] : memref<1x1x2x8xf32, #tpu.memory_space<vmem>>, vector<1x1x1x8xf32>
    %63 = vector.shape_cast %62 : vector<1x1x1x8xf32> to vector<1x8xf32>
    %64 = vector.shape_cast %61 : vector<1x8xf32> to vector<1x1x1x8xf32>
    tpu.vector_store %arg7[%c0_48, %c0_49, %c1_50, %c0_51], %64 {strides = array<i32>} : memref<1x1x2x8xf32, #tpu.memory_space<vmem>>, vector<1x1x1x8xf32>,
    return
  }
  func.func @transform_0(%arg0: i32, %arg1: i32) -> (i32, i32, i32, i32) {
    %c1_i32 = arith.constant 1 : i32
    %0 = arith.muli %arg1, %c1_i32 : i32
    %c0_i32 = arith.constant 0 : i32
    %1 = arith.addi %0, %c0_i32 : i32
    %c0_i32_0 = arith.constant 0 : i32
    %c0_i32_1 = arith.constant 0 : i32
    %c0_i32_2 = arith.constant 0 : i32
    return %arg0, %1, %c0_i32_0, %c0_i32_1 : i32, i32, i32, i32
  }
  func.func @transform_1(%arg0: i32, %arg1: i32) -> (i32, i32, i32, i32) {
    %c1_i32 = arith.constant 1 : i32
    %0 = arith.muli %arg1, %c1_i32 : i32
    %c1_i32_0 = arith.constant 1 : i32
    %1 = arith.addi %0, %c1_i32_0 : i32
    %c0_i32 = arith.constant 0 : i32
    %c0_i32_1 = arith.constant 0 : i32
    %c0_i32_2 = arith.constant 0 : i32
    return %arg0, %1, %c0_i32, %c0_i32_1 : i32, i32, i32, i32
  }
  func.func @transform_2(%arg0: i32, %arg1: i32) -> (i32, i32, i32, i32) {
    %c1_i32 = arith.constant 1 : i32
    %0 = arith.muli %arg1, %c1_i32 : i32
    %c2_i32 = arith.constant 2 : i32
    %1 = arith.addi %0, %c2_i32 : i32
    %c0_i32 = arith.constant 0 : i32
    %c0_i32_0 = arith.constant 0 : i32
    %c0_i32_1 = arith.constant 0 : i32
    return %arg0, %1, %c0_i32, %c0_i32_0 : i32, i32, i32, i32
  }
  func.func @transform_3(%arg0: i32, %arg1: i32) -> (i32, i32, i32) {
    %c0_i32 = arith.constant 0 : i32
    %c0_i32_0 = arith.constant 0 : i32
    %c0_i32_1 = arith.constant 0 : i32
    %c0_i32_2 = arith.constant 0 : i32
    return %c0_i32, %c0_i32_0, %c0_i32_1 : i32, i32, i32
  }
  func.func @transform_4(%arg0: i32, %arg1: i32) -> (i32, i32, i32, i32) {
    %c0_i32 = arith.constant 0 : i32
    %c0_i32_0 = arith.constant 0 : i32
    %c0_i32_1 = arith.constant 0 : i32
    return %arg0, %arg1, %c0_i32, %c0_i32_0 : i32, i32, i32, i32
  }
  func.func @transform_5(%arg0: i32, %arg1: i32) -> (i32, i32, i32, i32) {
    %c0_i32 = arith.constant 0 : i32
    %c0_i32_0 = arith.constant 0 : i32
    %c0_i32_1 = arith.constant 0 : i32
    return %arg0, %arg1, %c0_i32, %c0_i32_0 : i32, i32, i32, i32
  }
}

module attributes {stable_mosaic.version = 11 : i64} {
  func.func @_bn_act_kernel(%arg0: i32, %arg1: i32, %arg2: memref<1x16x16x8xbf16, #tpu.memory_space<vmem>>, %arg3: memref<1x1x8xf32, #tpu.memory_space<vmem>>, %arg4: memref<1x1x8xf32, #tpu.memory_space<vmem>>, %arg5: memref<1x16x16x8xf32, #tpu.memory_space<vmem>>) attributes {dimension_semantics = [#tpu.dimension_semantics<parallel>, #tpu.dimension_semantics<parallel>], iteration_bounds = array<i64: 2, 1>, scalar_prefetch = 0 : i64, scratch_operands = 0 : i64, tpu.core_type = #tpu.core_type<tc>, window_params = [{transform_indices = @transform_0, window_bounds = array<i64: 1, 16, 16, 8>}, {pipeline_mode = #tpu.pipeline_mode<synchronous>, transform_indices = @transform_1, window_bounds = array<i64: 1, 1, 8>}, {pipeline_mode = #tpu.pipeline_mode<synchronous>, transform_indices = @transform_2, window_bounds = array<i64: 1, 1, 8>}, {transform_indices = @transform_3, window_bounds = array<i64: 1, 16, 16, 8>}]} {
    %c0 = arith.constant 0 : index
    %c0_0 = arith.constant 0 : index
    %c0_1 = arith.constant 0 : index
    %c0_2 = arith.constant 0 : index
    %0 = vector.load %arg2[%c0, %c0_0, %c0_1, %c0_2] : memref<1x16x16x8xbf16, #tpu.memory_space<vmem>>, vector<1x16x16x8xbf16>
    %1 = vector.shape_cast %0 : vector<1x16x16x8xbf16> to vector<16x16x8xbf16>
    %2 = arith.extf %1 : vector<16x16x8xbf16> to vector<16x16x8xf32>
    %c0_3 = arith.constant 0 : index
    %c0_4 = arith.constant 0 : index
    %c0_5 = arith.constant 0 : index
    %3 = vector.load %arg3[%c0_3, %c0_4, %c0_5] : memref<1x1x8xf32, #tpu.memory_space<vmem>>, vector<1x1x8xf32>
    %4 = vector.broadcast %3 : vector<1x1x8xf32> to vector<16x16x8xf32>
    %5 = arith.mulf %2, %4 : vector<16x16x8xf32>
    %c0_6 = arith.constant 0 : index
    %c0_7 = arith.constant 0 : index
    %c0_8 = arith.constant 0 : index
    %6 = vector.load %arg4[%c0_6, %c0_7, %c0_8] : memref<1x1x8xf32, #tpu.memory_space<vmem>>, vector<1x1x8xf32>
    %7 = vector.broadcast %6 : vector<1x1x8xf32> to vector<16x16x8xf32>
    %8 = arith.addf %5, %7 : vector<16x16x8xf32>
    %cst = arith.constant 0.000000e+00 : f32
    %9 = vector.broadcast %cst : f32 to vector<16x16x8xf32>
    %10 = arith.cmpf oge, %8, %9 : vector<16x16x8xf32>
    %cst_9 = arith.constant 2.000000e-01 : f32
    %11 = vector.broadcast %cst_9 : f32 to vector<16x16x8xf32>
    %12 = arith.mulf %11, %8 : vector<16x16x8xf32>
    %13 = arith.select %10, %8, %12 : vector<16x16x8xi1>, vector<16x16x8xf32>
    %c0_10 = arith.constant 0 : index
    %c0_11 = arith.constant 0 : index
    %c0_12 = arith.constant 0 : index
    %c0_13 = arith.constant 0 : index
    %14 = vector.load %arg5[%c0_10, %c0_11, %c0_12, %c0_13] : memref<1x16x16x8xf32, #tpu.memory_space<vmem>>, vector<1x16x16x8xf32>
    %15 = vector.shape_cast %14 : vector<1x16x16x8xf32> to vector<16x16x8xf32>
    %16 = vector.shape_cast %13 : vector<16x16x8xf32> to vector<1x16x16x8xf32>
    tpu.vector_store %arg5[%c0_10, %c0_11, %c0_12, %c0_13], %16 {strides = array<i32>} : memref<1x16x16x8xf32, #tpu.memory_space<vmem>>, vector<1x16x16x8xf32>,
    return
  }
  func.func @transform_0(%arg0: i32, %arg1: i32) -> (i32, i32, i32, i32) {
    %c0_i32 = arith.constant 0 : i32
    %c0_i32_0 = arith.constant 0 : i32
    %c0_i32_1 = arith.constant 0 : i32
    return %arg0, %arg1, %c0_i32, %c0_i32_0 : i32, i32, i32, i32
  }
  func.func @transform_1(%arg0: i32, %arg1: i32) -> (i32, i32, i32) {
    %c0_i32 = arith.constant 0 : i32
    %c0_i32_0 = arith.constant 0 : i32
    %c0_i32_1 = arith.constant 0 : i32
    %c0_i32_2 = arith.constant 0 : i32
    return %c0_i32, %c0_i32_0, %c0_i32_1 : i32, i32, i32
  }
  func.func @transform_2(%arg0: i32, %arg1: i32) -> (i32, i32, i32) {
    %c0_i32 = arith.constant 0 : i32
    %c0_i32_0 = arith.constant 0 : i32
    %c0_i32_1 = arith.constant 0 : i32
    %c0_i32_2 = arith.constant 0 : i32
    return %c0_i32, %c0_i32_0, %c0_i32_1 : i32, i32, i32
  }
  func.func @transform_3(%arg0: i32, %arg1: i32) -> (i32, i32, i32, i32) {
    %c0_i32 = arith.constant 0 : i32
    %c0_i32_0 = arith.constant 0 : i32
    %c0_i32_1 = arith.constant 0 : i32
    return %arg0, %arg1, %c0_i32, %c0_i32_0 : i32, i32, i32, i32
  }
}

</mosaic_0001>

<llo_original>
// kernel: conv_block_forward.3
$region0: #{conv_block_forward.3}
  #allocation0 [shape = 'u32[]', space=smem, size = 0x4, offset = 0x4, fixed_abs, tag = 'smem constant byte address 0x4 - core index']
  #allocation1 [shape = 'u32[144,128]{1,0:T(1,128)}', space=vmem, size = 0x12000, scoped, tag = 'internal scratch']
  %s0 = inlined_call_operand.vmem [shape: bf16[2,16,16,8], index: 0, kind: input, shape index: {}]
  %s1 = inlined_call_operand.vmem [shape: f32[1,1,8], index: 1, kind: input, shape index: {}]
  %s2 = inlined_call_operand.vmem [shape: f32[1,1,8], index: 2, kind: input, shape index: {}]
  %s3 = inlined_call_operand.vmem [shape: f32[2,16,16,8], index: 3, kind: output, shape index: {}]
  %s4 = sld [smem:[#allocation0]]
  $region45: #{conv_block_forward.3} parent=0
    _
  %s6 = ssub.s32 1, %s4
  %s7 = scalar_select 0, %s6, %s4
  loop: start=0, step=1, limit=4
  $region2: #{conv_block_forward.3} parent=0 // loop_pre_header
    _
  $region3: #{conv_block_forward.3} parent=0 // loop_header
    %s9 = sphi 0, %s13
    %p10 = scmp.ge.s32.totalorder %s9, 4
    %s16 = sphi 0, %s28
    %s17 = sphi 0, %s24
    %s18 = sphi 0, %s16
    %s19 = sphi 0, %s17
    %s20 = sphi 0, %s18
    %s21 = sphi 0, %s19
    %s33 = sphi 0, %s35
    %s36 = sphi 0, %s33
    %s37 = sphi 0, %s36
    %s53 = sphi 0, %s37
    %s57 = sphi 0, %s57
    %s59 = sphi 0, %s57
    %s60 = sphi 0, %s59
    %s74 = sphi 0, %s60
    %s78 = sphi 0, %s78
    %s80 = sphi 0, %s78
    %s81 = sphi 0, %s80
    %s95 = sphi 0, %s81
    %s103 = sphi 0, %s105
    %s106 = sphi 0, %s103
    %s107 = sphi 0, %s106
    %s123 = sphi 0, %s107
  $region4: #{conv_block_forward.3} parent=0 // loop_header_branch
    %12 = sbr.rel (%p10) target = $region8
  $region5: #{conv_block_forward.3} parent=0 // loop_body
    %s14 = ssub.s32 %s9, 1
    %s15 = ssub.s32 %s9, 2
    %s22 = sadd.s32 1, %s17
    %p23 = scmp.ge.s32.totalorder %s22, 1
    %s24 = scalar_select %p23, 0, %s22
    %s25 = sadd.s32 1, %s16
    %s26 = scalar_select %p23, %s25, %s16
    %p27 = scmp.ge.s32.totalorder %s26, 2
    %s28 = scalar_select %p27, 0, %s26
    %s29 = ssub.s32 %s16, %s28
    %s30 = ssub.s32 %s17, %s24
    %s31 = sor.u32 %s29, %s30
    %p32 = scmp.eq.s32.totalorder %s31, 0
    %s34 = sadd.s32 %s33, 1
    %s35 = scalar_select %p32, %s33, %s34
    %p38 = pneg %p32
    %p39 = scmp.eq.s32.totalorder %s9, 1
    %p40 = por %p38, %p39
    %p41 = scmp.ne.s32.totalorder %s33, %s36
    %p42 = scmp.eq.s32.totalorder %s9, 0
    %p43 = por %p41, %p42
    %p44 = scmp.ne.s32.totalorder %s33, %s36
    %p45 = scmp.eq.s32.totalorder %s14, 1
    %p46 = por %p44, %p45
    %p47 = scmp.ne.s32.totalorder %s36, %s37
    %p48 = scmp.eq.s32.totalorder %s14, 0
    %p49 = por %p47, %p48
    %p50 = scmp.ne.s32.totalorder %s36, %s37
    %p51 = scmp.eq.s32.totalorder %s15, 1
    %p52 = por %p50, %p51
    %p54 = scmp.ne.s32.totalorder %s37, %s53
    %p55 = scmp.eq.s32.totalorder %s15, 0
    %p56 = por %p54, %p55
    %s58 = sadd.s32 %s57, 1
    %p61 = scmp.eq.s32.totalorder %s9, 1
    %p62 = scmp.ne.s32.totalorder %s57, %s59
    %p63 = scmp.eq.s32.totalorder %s9, 0
    %p64 = por %p62, %p63
    %p65 = scmp.ne.s32.totalorder %s57, %s59
    %p66 = scmp.eq.s32.totalorder %s14, 1
    %p67 = por %p65, %p66
    %p68 = scmp.ne.s32.totalorder %s59, %s60
    %p69 = scmp.eq.s32.totalorder %s14, 0
    %p70 = por %p68, %p69
    %p71 = scmp.ne.s32.totalorder %s59, %s60
    %p72 = scmp.eq.s32.totalorder %s15, 1
    %p73 = por %p71, %p72
    %p75 = scmp.ne.s32.totalorder %s60, %s74
    %p76 = scmp.eq.s32.totalorder %s15, 0
    %p77 = por %p75, %p76
    %s79 = sadd.s32 %s78, 1
    %p82 = scmp.eq.s32.totalorder %s9, 1
    %p83 = scmp.ne.s32.totalorder %s78, %s80
    %p84 = scmp.eq.s32.totalorder %s9, 0
    %p85 = por %p83, %p84
    %p86 = scmp.ne.s32.totalorder %s78, %s80
    %p87 = scmp.eq.s32.totalorder %s14, 1
    %p88 = por %p86, %p87
    %p89 = scmp.ne.s32.totalorder %s80, %s81
    %p90 = scmp.eq.s32.totalorder %s14, 0
    %p91 = por %p89, %p90
    %p92 = scmp.ne.s32.totalorder %s80, %s81
    %p93 = scmp.eq.s32.totalorder %s15, 1
    %p94 = por %p92, %p93
    %p96 = scmp.ne.s32.totalorder %s81, %s95
    %p97 = scmp.eq.s32.totalorder %s15, 0
    %p98 = por %p96, %p97
    %s99 = ssub.s32 %s16, %s28
    %s100 = ssub.s32 %s17, %s24
    %s101 = sor.u32 %s99, %s100
    %p102 = scmp.eq.s32.totalorder %s101, 0
    %s104 = sadd.s32 %s103, 1
    %s105 = scalar_select %p102, %s103, %s104
    %p108 = pneg %p102
    %p109 = scmp.eq.s32.totalorder %s9, 1
    %p110 = por %p108, %p109
    %p111 = scmp.ne.s32.totalorder %s103, %s106
    %p112 = scmp.eq.s32.totalorder %s9, 0
    %p113 = por %p111, %p112
    %p114 = scmp.ne.s32.totalorder %s103, %s106
    %p115 = scmp.eq.s32.totalorder %s14, 1
    %p116 = por %p114, %p115
    %p117 = scmp.ne.s32.totalorder %s106, %s107
    %p118 = scmp.eq.s32.totalorder %s14, 0
    %p119 = por %p117, %p118
    %p120 = scmp.ne.s32.totalorder %s106, %s107
    %p121 = scmp.eq.s32.totalorder %s15, 1
    %p122 = por %p120, %p121
    %p124 = scmp.ne.s32.totalorder %s107, %s123
    %p125 = scmp.eq.s32.totalorder %s15, 0
    %p126 = por %p124, %p125
    %p127 = scmp.le.s32.totalorder 1, %s9
    %p128 = scmp.lt.s32.totalorder %s9, 3
    %p129 = pnand %p127, %p128
    %p130 = pneg %p129
    // Predicated region
    $region9: #{conv_block_forward.3} parent=5 // pred_check
      _
    $region10: #{conv_block_forward.3} parent=5 // pred_check_branch
      %132 = sbr.rel (%p129) target = $region12
    $region11: #{conv_block_forward.3} parent=5 // pred_region
      %s133 = ssub.s32 %s9, 1
      // Predicated region
      $region13: #{conv_block_forward.3} parent=11 // pred_check
        %p134 = pneg %p70
      $region14: #{conv_block_forward.3} parent=11 // pred_check_branch
        %136 = sbr.rel (%p134) target = $region16
      $region15: #{conv_block_forward.3} parent=11 // pred_region
        _
      $region16: #{conv_block_forward.3} parent=11 // pred_fallthru
        _
      // Predicated region
      $region17: #{conv_block_forward.3} parent=11 // pred_check
        %p137 = pneg %p91
      $region18: #{conv_block_forward.3} parent=11 // pred_check_branch
        %139 = sbr.rel (%p137) target = $region20
      $region19: #{conv_block_forward.3} parent=11 // pred_region
        _
      $region20: #{conv_block_forward.3} parent=11 // pred_fallthru
        _
    $region12: #{conv_block_forward.3} parent=5 // pred_fallthru
      _
    %p140 = scmp.lt.s32.totalorder %s9, 2
    // Predicated region
    $region21: #{conv_block_forward.3} parent=5 // pred_check
      %p141 = pneg %p140
    $region22: #{conv_block_forward.3} parent=5 // pred_check_branch
      %143 = sbr.rel (%p141) target = $region24
    $region23: #{conv_block_forward.3} parent=5 // pred_region
      // Predicated region
      $region25: #{conv_block_forward.3} parent=23 // pred_check
        %p144 = pneg %p43
      $region26: #{conv_block_forward.3} parent=23 // pred_check_branch
        %146 = sbr.rel (%p144) target = $region28
      $region27: #{conv_block_forward.3} parent=23 // pred_region
        %s147 = smul.u32 16, %s17
        %p148 = scmp.lt.s32.totalorder %s16, 1
        %s149 = scalar_select %p148, %s16, 1
        %p150 = scmp.lt.s32.totalorder %s147, 15
        %s151 = scalar_select %p150, %s147, 15
        %s152 = smul.addr %s151, 2
        %s153 = smul.addr %s149, 32
        %s154 = sadd.s32 %s152, %s153
        %s155 = smul.addr %s154, 4
        %s156 = scalar_lea.vmem %s0, %s155
        %s157 = smul.u32 16, %s17
      $region28: #{conv_block_forward.3} parent=23 // pred_fallthru
        _
    $region24: #{conv_block_forward.3} parent=5 // pred_fallthru
      _
    %p158 = scmp.le.s32.totalorder 1, %s9
    %p159 = scmp.lt.s32.totalorder %s9, 3
    %p160 = pnand %p158, %p159
    %p161 = pneg %p160
    // Predicated region
    $region29: #{conv_block_forward.3} parent=5 // pred_check
      _
    $region30: #{conv_block_forward.3} parent=5 // pred_check_branch
      %163 = sbr.rel (%p160) target = $region32
    $region31: #{conv_block_forward.3} parent=5 // pred_region
      %s164 = ssub.s32 %s9, 1
      %s165 = smul.u32 16, %s19
      %p166 = scmp.lt.s32.totalorder %s18, 1
      %s167 = scalar_select %p166, %s18, 1
      %p168 = scmp.lt.s32.totalorder %s165, 15
      %s169 = scalar_select %p168, %s165, 15
      %s170 = smul.addr %s169, 2
      %s171 = smul.addr %s167, 32
      %s172 = sadd.s32 %s170, %s171
      %s173 = smul.addr %s172, 4
      %s174 = scalar_lea.vmem %s0, %s173
      %p175 = pneg %p49
      %p176 = pneg %p46
      %p177 = pneg %p70
      %p178 = pneg %p67
      %p179 = pneg %p91
      %p180 = pneg %p88
      %p181 = pneg %p119
      %p182 = pneg %p116
      %s183 = smul.u32 16, %s19
      %p184 = scmp.lt.s32.totalorder %s18, 1
      %s185 = scalar_select %p184, %s18, 1
      %p186 = scmp.lt.s32.totalorder %s183, 15
      %s187 = scalar_select %p186, %s183, 15
      %s188 = smul.addr %s187, 2
      %s189 = smul.addr %s185, 32
      %s190 = sadd.s32 %s188, %s189
      %s191 = smul.addr %s190, 8
      %s192 = scalar_lea.vmem %s3, %s191
      %s193 = smul.u32 16, %s19
      %p194 = scmp.lt.s32.totalorder %s18, 1
      %s195 = scalar_select %p194, %s18, 1
      %p196 = scmp.lt.s32.totalorder %s193, 15
      %s197 = scalar_select %p196, %s193, 15
      %s198 = smul.addr %s197, 2
      %s199 = smul.addr %s195, 32
      %s200 = sadd.s32 %s198, %s199
      %s201 = smul.addr %s200, 4
      %s202 = scalar_lea.vmem %s0, %s201
      %s203 = smul.u32 16, %s19
      %s204 = smul.u32 16, %s19
      %p205 = scmp.lt.s32.totalorder %s18, 1
      %s206 = scalar_select %p205, %s18, 1
      %p207 = scmp.lt.s32.totalorder %s204, 15
      %s208 = scalar_select %p207, %s204, 15
      %s209 = smul.addr %s208, 2
      %s210 = smul.addr %s206, 32
      %s211 = sadd.s32 %s209, %s210
      %s212 = smul.addr %s211, 8
      %s213 = scalar_lea.vmem %s3, %s212
      %s214 = smul.u32 16, %s19
      %v215 = vld [vmem:[%s202] sm:$0xf]
      %v216 = vld [vmem:[%s202 + $0x4] sm:$0xf]
      %v217 = vld [vmem:[%s202 + $0x8] sm:$0xf]
      %v218 = vld [vmem:[%s202 + $0xc] sm:$0xf]
      %v219 = vld [vmem:[%s202 + $0x10] sm:$0xf]
      %v220 = vld [vmem:[%s202 + $0x14] sm:$0xf]
      %v221 = vld [vmem:[%s202 + $0x18] sm:$0xf]
      %v222 = vld [vmem:[%s202 + $0x1c] sm:$0xf]
      %v223 = vld [vmem:[%s202 + $0x20] sm:$0xf]
      %v224 = vld [vmem:[%s202 + $0x24] sm:$0xf]
      %v225 = vld [vmem:[%s202 + $0x28] sm:$0xf]
      %v226 = vld [vmem:[%s202 + $0x2c] sm:$0xf]
      %v227 = vld [vmem:[%s202 + $0x30] sm:$0xf]
      %v228 = vld [vmem:[%s202 + $0x34] sm:$0xf]
      %v229 = vld [vmem:[%s202 + $0x38] sm:$0xf]
      %v230 = vld [vmem:[%s202 + $0x3c] sm:$0xf]
      %v231 = vld [vmem:[%s202 + $0x40] sm:$0xf]
      %v232 = vld [vmem:[%s202 + $0x44] sm:$0xf]
      %v233 = vld [vmem:[%s202 + $0x48] sm:$0xf]
      %v234 = vld [vmem:[%s202 + $0x4c] sm:$0xf]
      %v235 = vld [vmem:[%s202 + $0x50] sm:$0xf]
      %v236 = vld [vmem:[%s202 + $0x54] sm:$0xf]
      %v237 = vld [vmem:[%s202 + $0x58] sm:$0xf]
      %v238 = vld [vmem:[%s202 + $0x5c] sm:$0xf]
      %v239 = vld [vmem:[%s202 + $0x60] sm:$0xf]
      %v240 = vld [vmem:[%s202 + $0x64] sm:$0xf]
      %v241 = vld [vmem:[%s202 + $0x68] sm:$0xf]
      %v242 = vld [vmem:[%s202 + $0x6c] sm:$0xf]
      %v243 = vld [vmem:[%s202 + $0x70] sm:$0xf]
      %v244 = vld [vmem:[%s202 + $0x74] sm:$0xf]
      %v245 = vld [vmem:[%s202 + $0x78] sm:$0xf]
      %v246 = vld [vmem:[%s202 + $0x7c] sm:$0xf]
      %v247 = vunpack.c.l.bf16 %v215
      %v248 = vunpack.c.l.bf16 %v216
      %v249 = vunpack.c.l.bf16 %v217
      %v250 = vunpack.c.l.bf16 %v218
      %v251 = vunpack.c.l.bf16 %v219
      %v252 = vunpack.c.l.bf16 %v220
      %v253 = vunpack.c.l.bf16 %v221
      %v254 = vunpack.c.l.bf16 %v222
      %v255 = vunpack.c.l.bf16 %v223
      %v256 = vunpack.c.l.bf16 %v224
      %v257 = vunpack.c.l.bf16 %v225
      %v258 = vunpack.c.l.bf16 %v226
      %v259 = vunpack.c.l.bf16 %v227
      %v260 = vunpack.c.l.bf16 %v228
      %v261 = vunpack.c.l.bf16 %v229
      %v262 = vunpack.c.l.bf16 %v230
      %v263 = vunpack.c.l.bf16 %v231
      %v264 = vunpack.c.l.bf16 %v232
      %v265 = vunpack.c.l.bf16 %v233
      %v266 = vunpack.c.l.bf16 %v234
      %v267 = vunpack.c.l.bf16 %v235
      %v268 = vunpack.c.l.bf16 %v236
      %v269 = vunpack.c.l.bf16 %v237
      %v270 = vunpack.c.l.bf16 %v238
      %v271 = vunpack.c.l.bf16 %v239
      %v272 = vunpack.c.l.bf16 %v240
      %v273 = vunpack.c.l.bf16 %v241
      %v274 = vunpack.c.l.bf16 %v242
      %v275 = vunpack.c.l.bf16 %v243
      %v276 = vunpack.c.l.bf16 %v244
      %v277 = vunpack.c.l.bf16 %v245
      %v278 = vunpack.c.l.bf16 %v246
      %v279 = vld [vmem:[%s1] sm:$0x1]
      %v281 = vlaneseq
      %v282 = vshrl.u32 %v281, 7
      %v283 = vsub.s32 0, %v282
      %v284 = vrot.slane %v279, %v283
      %v286 = vmul.f32 %v247, %v284
      %v287 = vmul.f32 %v248, %v284
      %v288 = vmul.f32 %v249, %v284
      %v289 = vmul.f32 %v250, %v284
      %v290 = vmul.f32 %v251, %v284
      %v291 = vmul.f32 %v252, %v284
      %v292 = vmul.f32 %v253, %v284
      %v293 = vmul.f32 %v254, %v284
      %v294 = vmul.f32 %v255, %v284
      %v295 = vmul.f32 %v256, %v284
      %v296 = vmul.f32 %v257, %v284
      %v297 = vmul.f32 %v258, %v284
      %v298 = vmul.f32 %v259, %v284
      %v299 = vmul.f32 %v260, %v284
      %v300 = vmul.f32 %v261, %v284
      %v301 = vmul.f32 %v262, %v284
      %v302 = vmul.f32 %v263, %v284
      %v303 = vmul.f32 %v264, %v284
      %v304 = vmul.f32 %v265, %v284
      %v305 = vmul.f32 %v266, %v284
      %v306 = vmul.f32 %v267, %v284
      %v307 = vmul.f32 %v268, %v284
      %v308 = vmul.f32 %v269, %v284
      %v309 = vmul.f32 %v270, %v284
      %v310 = vmul.f32 %v271, %v284
      %v311 = vmul.f32 %v272, %v284
      %v312 = vmul.f32 %v273, %v284
      %v313 = vmul.f32 %v274, %v284
      %v314 = vmul.f32 %v275, %v284
      %v315 = vmul.f32 %v276, %v284
      %v316 = vmul.f32 %v277, %v284
      %v317 = vmul.f32 %v278, %v284
      %v318 = vld [vmem:[%s2] sm:$0x1]
      %v320 = vlaneseq
      %v321 = vshrl.u32 %v320, 7
      %v322 = vsub.s32 0, %v321
      %v323 = vrot.slane %v318, %v322
      %v325 = vadd.f32 %v286, %v323
      %v326 = vadd.f32 %v287, %v323
      %v327 = vadd.f32 %v288, %v323
      %v328 = vadd.f32 %v289, %v323
      %v329 = vadd.f32 %v290, %v323
      %v330 = vadd.f32 %v291, %v323
      %v331 = vadd.f32 %v292, %v323
      %v332 = vadd.f32 %v293, %v323
      %v333 = vadd.f32 %v294, %v323
      %v334 = vadd.f32 %v295, %v323
      %v335 = vadd.f32 %v296, %v323
      %v336 = vadd.f32 %v297, %v323
      %v337 = vadd.f32 %v298, %v323
      %v338 = vadd.f32 %v299, %v323
      %v339 = vadd.f32 %v300, %v323
      %v340 = vadd.f32 %v301, %v323
      %v341 = vadd.f32 %v302, %v323
      %v342 = vadd.f32 %v303, %v323
      %v343 = vadd.f32 %v304, %v323
      %v344 = vadd.f32 %v305, %v323
      %v345 = vadd.f32 %v306, %v323
      %v346 = vadd.f32 %v307, %v323
      %v347 = vadd.f32 %v308, %v323
      %v348 = vadd.f32 %v309, %v323
      %v349 = vadd.f32 %v310, %v323
      %v350 = vadd.f32 %v311, %v323
      %v351 = vadd.f32 %v312, %v323
      %v352 = vadd.f32 %v313, %v323
      %v353 = vadd.f32 %v314, %v323
      %v354 = vadd.f32 %v315, %v323
      %v355 = vadd.f32 %v316, %v323
      %v356 = vadd.f32 %v317, %v323
      %vm357 = vcmp.ge.f32.partialorder %v325, 0.0
      %vm358 = vcmp.ge.f32.partialorder %v326, 0.0
      %vm359 = vcmp.ge.f32.partialorder %v327, 0.0
      %vm360 = vcmp.ge.f32.partialorder %v328, 0.0
      %vm361 = vcmp.ge.f32.partialorder %v329, 0.0
      %vm362 = vcmp.ge.f32.partialorder %v330, 0.0
      %vm363 = vcmp.ge.f32.partialorder %v331, 0.0
      %vm364 = vcmp.ge.f32.partialorder %v332, 0.0
      %vm365 = vcmp.ge.f32.partialorder %v333, 0.0
      %vm366 = vcmp.ge.f32.partialorder %v334, 0.0
      %vm367 = vcmp.ge.f32.partialorder %v335, 0.0
      %vm368 = vcmp.ge.f32.partialorder %v336, 0.0
      %vm369 = vcmp.ge.f32.partialorder %v337, 0.0
      %vm370 = vcmp.ge.f32.partialorder %v338, 0.0
      %vm371 = vcmp.ge.f32.partialorder %v339, 0.0
      %vm372 = vcmp.ge.f32.partialorder %v340, 0.0
      %vm373 = vcmp.ge.f32.partialorder %v341, 0.0
      %vm374 = vcmp.ge.f32.partialorder %v342, 0.0
      %vm375 = vcmp.ge.f32.partialorder %v343, 0.0
      %vm376 = vcmp.ge.f32.partialorder %v344, 0.0
      %vm377 = vcmp.ge.f32.partialorder %v345, 0.0
      %vm378 = vcmp.ge.f32.partialorder %v346, 0.0
      %vm379 = vcmp.ge.f32.partialorder %v347, 0.0
      %vm380 = vcmp.ge.f32.partialorder %v348, 0.0
      %vm381 = vcmp.ge.f32.partialorder %v349, 0.0
      %vm382 = vcmp.ge.f32.partialorder %v350, 0.0
      %vm383 = vcmp.ge.f32.partialorder %v351, 0.0
      %vm384 = vcmp.ge.f32.partialorder %v352, 0.0
      %vm385 = vcmp.ge.f32.partialorder %v353, 0.0
      %vm386 = vcmp.ge.f32.partialorder %v354, 0.0
      %vm387 = vcmp.ge.f32.partialorder %v355, 0.0
      %vm388 = vcmp.ge.f32.partialorder %v356, 0.0
      %v389 = vmul.f32 %v325, 0.2
      %v390 = vmul.f32 %v326, 0.2
      %v391 = vmul.f32 %v327, 0.2
      %v392 = vmul.f32 %v328, 0.2
      %v393 = vmul.f32 %v329, 0.2
      %v394 = vmul.f32 %v330, 0.2
      %v395 = vmul.f32 %v331, 0.2
      %v396 = vmul.f32 %v332, 0.2
      %v397 = vmul.f32 %v333, 0.2
      %v398 = vmul.f32 %v334, 0.2
      %v399 = vmul.f32 %v335, 0.2
      %v400 = vmul.f32 %v336, 0.2
      %v401 = vmul.f32 %v337, 0.2
      %v402 = vmul.f32 %v338, 0.2
      %v403 = vmul.f32 %v339, 0.2
      %v404 = vmul.f32 %v340, 0.2
      %v405 = vmul.f32 %v341, 0.2
      %v406 = vmul.f32 %v342, 0.2
      %v407 = vmul.f32 %v343, 0.2
      %v408 = vmul.f32 %v344, 0.2
      %v409 = vmul.f32 %v345, 0.2
      %v410 = vmul.f32 %v346, 0.2
      %v411 = vmul.f32 %v347, 0.2
      %v412 = vmul.f32 %v348, 0.2
      %v413 = vmul.f32 %v349, 0.2
      %v414 = vmul.f32 %v350, 0.2
      %v415 = vmul.f32 %v351, 0.2
      %v416 = vmul.f32 %v352, 0.2
      %v417 = vmul.f32 %v353, 0.2
      %v418 = vmul.f32 %v354, 0.2
      %v419 = vmul.f32 %v355, 0.2
      %v420 = vmul.f32 %v356, 0.2
      %v421 = vsel %vm357, %v325, %v389
      %v422 = vsel %vm358, %v326, %v390
      %v423 = vsel %vm359, %v327, %v391
      %v424 = vsel %vm360, %v328, %v392
      %v425 = vsel %vm361, %v329, %v393
      %v426 = vsel %vm362, %v330, %v394
      %v427 = vsel %vm363, %v331, %v395
      %v428 = vsel %vm364, %v332, %v396
      %v429 = vsel %vm365, %v333, %v397
      %v430 = vsel %vm366, %v334, %v398
      %v431 = vsel %vm367, %v335, %v399
      %v432 = vsel %vm368, %v336, %v400
      %v433 = vsel %vm369, %v337, %v401
      %v434 = vsel %vm370, %v338, %v402
      %v435 = vsel %vm371, %v339, %v403
      %v436 = vsel %vm372, %v340, %v404
      %v437 = vsel %vm373, %v341, %v405
      %v438 = vsel %vm374, %v342, %v406
      %v439 = vsel %vm375, %v343, %v407
      %v440 = vsel %vm376, %v344, %v408
      %v441 = vsel %vm377, %v345, %v409
      %v442 = vsel %vm378, %v346, %v410
      %v443 = vsel %vm379, %v347, %v411
      %v444 = vsel %vm380, %v348, %v412
      %v445 = vsel %vm381, %v349, %v413
      %v446 = vsel %vm382, %v350, %v414
      %v447 = vsel %vm383, %v351, %v415
      %v448 = vsel %vm384, %v352, %v416
      %v449 = vsel %vm385, %v353, %v417
      %v450 = vsel %vm386, %v354, %v418
      %v451 = vsel %vm387, %v355, %v419
      %v452 = vsel %vm388, %v356, %v420
      %vm453 = vcmask 64512
      %454 = vst.msk [vmem:[%s213] sm:$0xff] %vm453, %v421
      %455 = vst.msk [vmem:[%s213 + $0x8] sm:$0xff] %vm453, %v422
      %456 = vst.msk [vmem:[%s213 + $0x10] sm:$0xff] %vm453, %v423
      %457 = vst.msk [vmem:[%s213 + $0x18] sm:$0xff] %vm453, %v424
      %458 = vst.msk [vmem:[%s213 + $0x20] sm:$0xff] %vm453, %v425
      %459 = vst.msk [vmem:[%s213 + $0x28] sm:$0xff] %vm453, %v426
      %460 = vst.msk [vmem:[%s213 + $0x30] sm:$0xff] %vm453, %v427
      %461 = vst.msk [vmem:[%s213 + $0x38] sm:$0xff] %vm453, %v428
      %462 = vst.msk [vmem:[%s213 + $0x40] sm:$0xff] %vm453, %v429
      %463 = vst.msk [vmem:[%s213 + $0x48] sm:$0xff] %vm453, %v430
      %464 = vst.msk [vmem:[%s213 + $0x50] sm:$0xff] %vm453, %v431
      %465 = vst.msk [vmem:[%s213 + $0x58] sm:$0xff] %vm453, %v432
      %466 = vst.msk [vmem:[%s213 + $0x60] sm:$0xff] %vm453, %v433
      %467 = vst.msk [vmem:[%s213 + $0x68] sm:$0xff] %vm453, %v434
      %468 = vst.msk [vmem:[%s213 + $0x70] sm:$0xff] %vm453, %v435
      %469 = vst.msk [vmem:[%s213 + $0x78] sm:$0xff] %vm453, %v436
      %470 = vst.msk [vmem:[%s213 + $0x80] sm:$0xff] %vm453, %v437
      %471 = vst.msk [vmem:[%s213 + $0x88] sm:$0xff] %vm453, %v438
      %472 = vst.msk [vmem:[%s213 + $0x90] sm:$0xff] %vm453, %v439
      %473 = vst.msk [vmem:[%s213 + $0x98] sm:$0xff] %vm453, %v440
      %474 = vst.msk [vmem:[%s213 + $0xa0] sm:$0xff] %vm453, %v441
      %475 = vst.msk [vmem:[%s213 + $0xa8] sm:$0xff] %vm453, %v442
      %476 = vst.msk [vmem:[%s213 + $0xb0] sm:$0xff] %vm453, %v443
      %477 = vst.msk [vmem:[%s213 + $0xb8] sm:$0xff] %vm453, %v444
      %478 = vst.msk [vmem:[%s213 + $0xc0] sm:$0xff] %vm453, %v445
      %479 = vst.msk [vmem:[%s213 + $0xc8] sm:$0xff] %vm453, %v446
      %480 = vst.msk [vmem:[%s213 + $0xd0] sm:$0xff] %vm453, %v447
      %481 = vst.msk [vmem:[%s213 + $0xd8] sm:$0xff] %vm453, %v448
      %482 = vst.msk [vmem:[%s213 + $0xe0] sm:$0xff] %vm453, %v449
      %483 = vst.msk [vmem:[%s213 + $0xe8] sm:$0xff] %vm453, %v450
      %484 = vst.msk [vmem:[%s213 + $0xf0] sm:$0xff] %vm453, %v451
      %485 = vst.msk [vmem:[%s213 + $0xf8] sm:$0xff] %vm453, %v452
      %s486 = smul.u32 16, %s19
      %p487 = scmp.lt.s32.totalorder %s18, 1
      %s488 = scalar_select %p487, %s18, 1
      %p489 = scmp.lt.s32.totalorder %s486, 15
      %s490 = scalar_select %p489, %s486, 15
      %s491 = smul.addr %s490, 2
      %s492 = smul.addr %s488, 32
      %s493 = sadd.s32 %s491, %s492
      %s494 = smul.addr %s493, 8
      %s495 = scalar_lea.vmem %s3, %s494
      // Predicated region
      $region33: #{conv_block_forward.3} parent=31 // pred_check
        %p496 = pneg %p116
      $region34: #{conv_block_forward.3} parent=31 // pred_check_branch
        %498 = sbr.rel (%p496) target = $region36
      $region35: #{conv_block_forward.3} parent=31 // pred_region
        %s499 = smul.u32 16, %s19
      $region36: #{conv_block_forward.3} parent=31 // pred_fallthru
        _
    $region32: #{conv_block_forward.3} parent=5 // pred_fallthru
      _
    %p500 = scmp.le.s32.totalorder 2, %s9
    // Predicated region
    $region37: #{conv_block_forward.3} parent=5 // pred_check
      %p501 = pneg %p500
    $region38: #{conv_block_forward.3} parent=5 // pred_check_branch
      %503 = sbr.rel (%p501) target = $region40
    $region39: #{conv_block_forward.3} parent=5 // pred_region
      %s504 = ssub.s32 %s9, 2
      // Predicated region
      $region41: #{conv_block_forward.3} parent=39 // pred_check
        %p505 = pneg %p122
      $region42: #{conv_block_forward.3} parent=39 // pred_check_branch
        %507 = sbr.rel (%p505) target = $region44
      $region43: #{conv_block_forward.3} parent=39 // pred_region
        %s508 = smul.u32 16, %s21
        %p509 = scmp.lt.s32.totalorder %s20, 1
        %s510 = scalar_select %p509, %s20, 1
        %p511 = scmp.lt.s32.totalorder %s508, 15
        %s512 = scalar_select %p511, %s508, 15
        %s513 = smul.addr %s512, 2
        %s514 = smul.addr %s510, 32
        %s515 = sadd.s32 %s513, %s514
        %s516 = smul.addr %s515, 8
        %s517 = scalar_lea.vmem %s3, %s516
      $region44: #{conv_block_forward.3} parent=39 // pred_fallthru
        _
    $region40: #{conv_block_forward.3} parent=5 // pred_fallthru
      _
  $region6: #{conv_block_forward.3} parent=0 // loop_footer
    %s13 = sadd.s32 1, %s9
  $region7: #{conv_block_forward.3} parent=0 // loop_footer_branch
    %8 = sbr.rel target = $region3
  $region8: #{conv_block_forward.3} parent=0 // loop_exit
    _

// kernel: conv_block_forward.2
$region0: #{conv_block_forward.2}
  #allocation0 [shape = 'u32[]', space=smem, size = 0x4, offset = 0x4, fixed_abs, tag = 'smem constant byte address 0x4 - core index']
  #allocation1 [shape = 'u32[144,128]{1,0:T(1,128)}', space=vmem, size = 0x12000, scoped, tag = 'internal scratch']
  %s0 = inlined_call_operand.vmem [shape: bf16[2,18,18,4], index: 0, kind: input, shape index: {}, may-alias: {0,1,2}]
  %s1 = inlined_call_operand.vmem [shape: bf16[2,18,18,4], index: 1, kind: input, shape index: {}, may-alias: {0,1,2}]
  %s2 = inlined_call_operand.vmem [shape: bf16[2,18,18,4], index: 2, kind: input, shape index: {}, may-alias: {0,1,2}]
  %s3 = inlined_call_operand.vmem [shape: bf16[9,4,8], index: 3, kind: input, shape index: {}]
  %s4 = inlined_call_operand.vmem [shape: bf16[2,16,16,8], index: 4, kind: output, shape index: {0}]
  %s5 = inlined_call_operand.vmem [shape: f32[2,16,2,8], index: 5, kind: output, shape index: {1}]
  %6 = xla_tuple %s4, %s5
  %s7 = sld [smem:[#allocation0]]
  $region57: #{conv_block_forward.2} parent=0
    _
  %s9 = ssub.s32 1, %s7
  %s10 = scalar_select 0, %s9, %s7
  loop: start=0, step=1, limit=34
  $region2: #{conv_block_forward.2} parent=0 // loop_pre_header
    _
  $region3: #{conv_block_forward.2} parent=0 // loop_header
    %s12 = sphi 0, %s16
    %p13 = scmp.ge.s32.totalorder %s12, 34
    %s19 = sphi 0, %s31
    %s20 = sphi 0, %s27
    %s21 = sphi 0, %s19
    %s22 = sphi 0, %s20
    %s23 = sphi 0, %s21
    %s24 = sphi 0, %s22
    %s36 = sphi 0, %s38
    %s39 = sphi 0, %s36
    %s40 = sphi 0, %s39
    %s56 = sphi 0, %s40
    %s66 = sphi 0, %s68
    %s69 = sphi 0, %s66
    %s70 = sphi 0, %s69
    %s86 = sphi 0, %s70
    %s96 = sphi 0, %s98
    %s99 = sphi 0, %s96
    %s100 = sphi 0, %s99
    %s116 = sphi 0, %s100
    %s120 = sphi 0, %s120
    %s122 = sphi 0, %s120
    %s123 = sphi 0, %s122
    %s137 = sphi 0, %s123
    %s145 = sphi 0, %s147
    %s148 = sphi 0, %s145
    %s149 = sphi 0, %s148
    %s165 = sphi 0, %s149
    %s173 = sphi 0, %s175
    %s176 = sphi 0, %s173
    %s177 = sphi 0, %s176
    %s193 = sphi 0, %s177
  $region4: #{conv_block_forward.2} parent=0 // loop_header_branch
    %15 = sbr.rel (%p13) target = $region8
  $region5: #{conv_block_forward.2} parent=0 // loop_body
    %s17 = ssub.s32 %s12, 1
    %s18 = ssub.s32 %s12, 2
    %s25 = sadd.s32 1, %s20
    %p26 = scmp.ge.s32.totalorder %s25, 16
    %s27 = scalar_select %p26, 0, %s25
    %s28 = sadd.s32 1, %s19
    %s29 = scalar_select %p26, %s28, %s19
    %p30 = scmp.ge.s32.totalorder %s29, 2
    %s31 = scalar_select %p30, 0, %s29
    %s32 = ssub.s32 %s19, %s31
    %s33 = ssub.s32 %s20, %s27
    %s34 = sor.u32 %s32, %s33
    %p35 = scmp.eq.s32.totalorder %s34, 0
    %s37 = sadd.s32 %s36, 1
    %s38 = scalar_select %p35, %s36, %s37
    %p41 = pneg %p35
    %p42 = scmp.eq.s32.totalorder %s12, 31
    %p43 = por %p41, %p42
    %p44 = scmp.ne.s32.totalorder %s36, %s39
    %p45 = scmp.eq.s32.totalorder %s12, 0
    %p46 = por %p44, %p45
    %p47 = scmp.ne.s32.totalorder %s36, %s39
    %p48 = scmp.eq.s32.totalorder %s17, 31
    %p49 = por %p47, %p48
    %p50 = scmp.ne.s32.totalorder %s39, %s40
    %p51 = scmp.eq.s32.totalorder %s17, 0
    %p52 = por %p50, %p51
    %p53 = scmp.ne.s32.totalorder %s39, %s40
    %p54 = scmp.eq.s32.totalorder %s18, 31
    %p55 = por %p53, %p54
    %p57 = scmp.ne.s32.totalorder %s40, %s56
    %p58 = scmp.eq.s32.totalorder %s18, 0
    %p59 = por %p57, %p58
    %s60 = sadd.s32 %s20, 1
    %s61 = sadd.s32 %s27, 1
    %s62 = ssub.s32 %s19, %s31
    %s63 = ssub.s32 %s60, %s61
    %s64 = sor.u32 %s62, %s63
    %p65 = scmp.eq.s32.totalorder %s64, 0
    %s67 = sadd.s32 %s66, 1
    %s68 = scalar_select %p65, %s66, %s67
    %p71 = pneg %p65
    %p72 = scmp.eq.s32.totalorder %s12, 31
    %p73 = por %p71, %p72
    %p74 = scmp.ne.s32.totalorder %s66, %s69
    %p75 = scmp.eq.s32.totalorder %s12, 0
    %p76 = por %p74, %p75
    %p77 = scmp.ne.s32.totalorder %s66, %s69
    %p78 = scmp.eq.s32.totalorder %s17, 31
    %p79 = por %p77, %p78
    %p80 = scmp.ne.s32.totalorder %s69, %s70
    %p81 = scmp.eq.s32.totalorder %s17, 0
    %p82 = por %p80, %p81
    %p83 = scmp.ne.s32.totalorder %s69, %s70
    %p84 = scmp.eq.s32.totalorder %s18, 31
    %p85 = por %p83, %p84
    %p87 = scmp.ne.s32.totalorder %s70, %s86
    %p88 = scmp.eq.s32.totalorder %s18, 0
    %p89 = por %p87, %p88
    %s90 = sadd.s32 %s20, 2
    %s91 = sadd.s32 %s27, 2
    %s92 = ssub.s32 %s19, %s31
    %s93 = ssub.s32 %s90, %s91
    %s94 = sor.u32 %s92, %s93
    %p95 = scmp.eq.s32.totalorder %s94, 0
    %s97 = sadd.s32 %s96, 1
    %s98 = scalar_select %p95, %s96, %s97
    %p101 = pneg %p95
    %p102 = scmp.eq.s32.totalorder %s12, 31
    %p103 = por %p101, %p102
    %p104 = scmp.ne.s32.totalorder %s96, %s99
    %p105 = scmp.eq.s32.totalorder %s12, 0
    %p106 = por %p104, %p105
    %p107 = scmp.ne.s32.totalorder %s96, %s99
    %p108 = scmp.eq.s32.totalorder %s17, 31
    %p109 = por %p107, %p108
    %p110 = scmp.ne.s32.totalorder %s99, %s100
    %p111 = scmp.eq.s32.totalorder %s17, 0
    %p112 = por %p110, %p111
    %p113 = scmp.ne.s32.totalorder %s99, %s100
    %p114 = scmp.eq.s32.totalorder %s18, 31
    %p115 = por %p113, %p114
    %p117 = scmp.ne.s32.totalorder %s100, %s116
    %p118 = scmp.eq.s32.totalorder %s18, 0
    %p119 = por %p117, %p118
    %s121 = sadd.s32 %s120, 1
    %p124 = scmp.eq.s32.totalorder %s12, 31
    %p125 = scmp.ne.s32.totalorder %s120, %s122
    %p126 = scmp.eq.s32.totalorder %s12, 0
    %p127 = por %p125, %p126
    %p128 = scmp.ne.s32.totalorder %s120, %s122
    %p129 = scmp.eq.s32.totalorder %s17, 31
    %p130 = por %p128, %p129
    %p131 = scmp.ne.s32.totalorder %s122, %s123
    %p132 = scmp.eq.s32.totalorder %s17, 0
    %p133 = por %p131, %p132
    %p134 = scmp.ne.s32.totalorder %s122, %s123
    %p135 = scmp.eq.s32.totalorder %s18, 31
    %p136 = por %p134, %p135
    %p138 = scmp.ne.s32.totalorder %s123, %s137
    %p139 = scmp.eq.s32.totalorder %s18, 0
    %p140 = por %p138, %p139
    %s141 = ssub.s32 %s19, %s31
    %s142 = ssub.s32 %s20, %s27
    %s143 = sor.u32 %s141, %s142
    %p144 = scmp.eq.s32.totalorder %s143, 0
    %s146 = sadd.s32 %s145, 1
    %s147 = scalar_select %p144, %s145, %s146
    %p150 = pneg %p144
    %p151 = scmp.eq.s32.totalorder %s12, 31
    %p152 = por %p150, %p151
    %p153 = scmp.ne.s32.totalorder %s145, %s148
    %p154 = scmp.eq.s32.totalorder %s12, 0
    %p155 = por %p153, %p154
    %p156 = scmp.ne.s32.totalorder %s145, %s148
    %p157 = scmp.eq.s32.totalorder %s17, 31
    %p158 = por %p156, %p157
    %p159 = scmp.ne.s32.totalorder %s148, %s149
    %p160 = scmp.eq.s32.totalorder %s17, 0
    %p161 = por %p159, %p160
    %p162 = scmp.ne.s32.totalorder %s148, %s149
    %p163 = scmp.eq.s32.totalorder %s18, 31
    %p164 = por %p162, %p163
    %p166 = scmp.ne.s32.totalorder %s149, %s165
    %p167 = scmp.eq.s32.totalorder %s18, 0
    %p168 = por %p166, %p167
    %s169 = ssub.s32 %s19, %s31
    %s170 = ssub.s32 %s20, %s27
    %s171 = sor.u32 %s169, %s170
    %p172 = scmp.eq.s32.totalorder %s171, 0
    %s174 = sadd.s32 %s173, 1
    %s175 = scalar_select %p172, %s173, %s174
    %p178 = pneg %p172
    %p179 = scmp.eq.s32.totalorder %s12, 31
    %p180 = por %p178, %p179
    %p181 = scmp.ne.s32.totalorder %s173, %s176
    %p182 = scmp.eq.s32.totalorder %s12, 0
    %p183 = por %p181, %p182
    %p184 = scmp.ne.s32.totalorder %s173, %s176
    %p185 = scmp.eq.s32.totalorder %s17, 31
    %p186 = por %p184, %p185
    %p187 = scmp.ne.s32.totalorder %s176, %s177
    %p188 = scmp.eq.s32.totalorder %s17, 0
    %p189 = por %p187, %p188
    %p190 = scmp.ne.s32.totalorder %s176, %s177
    %p191 = scmp.eq.s32.totalorder %s18, 31
    %p192 = por %p190, %p191
    %p194 = scmp.ne.s32.totalorder %s177, %s193
    %p195 = scmp.eq.s32.totalorder %s18, 0
    %p196 = por %p194, %p195
    %p197 = scmp.le.s32.totalorder 1, %s12
    %p198 = scmp.lt.s32.totalorder %s12, 33
    %p199 = pnand %p197, %p198
    %p200 = pneg %p199
    // Predicated region
    $region9: #{conv_block_forward.2} parent=5 // pred_check
      _
    $region10: #{conv_block_forward.2} parent=5 // pred_check_branch
      %202 = sbr.rel (%p199) target = $region12
    $region11: #{conv_block_forward.2} parent=5 // pred_region
      %s203 = ssub.s32 %s12, 1
      // Predicated region
      $region13: #{conv_block_forward.2} parent=11 // pred_check
        %p204 = pneg %p133
      $region14: #{conv_block_forward.2} parent=11 // pred_check_branch
        %206 = sbr.rel (%p204) target = $region16
      $region15: #{conv_block_forward.2} parent=11 // pred_region
        _
      $region16: #{conv_block_forward.2} parent=11 // pred_fallthru
        _
    $region12: #{conv_block_forward.2} parent=5 // pred_fallthru
      _
    %p207 = scmp.lt.s32.totalorder %s12, 32
    // Predicated region
    $region17: #{conv_block_forward.2} parent=5 // pred_check
      %p208 = pneg %p207
    $region18: #{conv_block_forward.2} parent=5 // pred_check_branch
      %210 = sbr.rel (%p208) target = $region20
    $region19: #{conv_block_forward.2} parent=5 // pred_region
      // Predicated region
      $region21: #{conv_block_forward.2} parent=19 // pred_check
        %p211 = pneg %p46
      $region22: #{conv_block_forward.2} parent=19 // pred_check_branch
        %213 = sbr.rel (%p211) target = $region24
      $region23: #{conv_block_forward.2} parent=19 // pred_region
        %p214 = scmp.lt.s32.totalorder %s19, 1
        %s215 = scalar_select %p214, %s19, 1
        %p216 = scmp.lt.s32.totalorder %s20, 17
        %s217 = scalar_select %p216, %s20, 17
        %s218 = smul.addr %s217, 3
        %s219 = smul.addr %s215, 54
        %s220 = sadd.s32 %s218, %s219
        %s221 = smul.addr %s220, 4
        %s222 = scalar_lea.vmem %s0, %s221
      $region24: #{conv_block_forward.2} parent=19 // pred_fallthru
        _
      // Predicated region
      $region25: #{conv_block_forward.2} parent=19 // pred_check
        %p223 = pneg %p76
      $region26: #{conv_block_forward.2} parent=19 // pred_check_branch
        %225 = sbr.rel (%p223) target = $region28
      $region27: #{conv_block_forward.2} parent=19 // pred_region
        %s226 = sadd.s32 %s20, 1
        %p227 = scmp.lt.s32.totalorder %s19, 1
        %s228 = scalar_select %p227, %s19, 1
        %p229 = scmp.lt.s32.totalorder %s226, 17
        %s230 = scalar_select %p229, %s226, 17
        %s231 = smul.addr %s230, 3
        %s232 = smul.addr %s228, 54
        %s233 = sadd.s32 %s231, %s232
        %s234 = smul.addr %s233, 4
        %s235 = scalar_lea.vmem %s1, %s234
        %s236 = sadd.s32 %s20, 1
      $region28: #{conv_block_forward.2} parent=19 // pred_fallthru
        _
      // Predicated region
      $region29: #{conv_block_forward.2} parent=19 // pred_check
        %p237 = pneg %p106
      $region30: #{conv_block_forward.2} parent=19 // pred_check_branch
        %239 = sbr.rel (%p237) target = $region32
      $region31: #{conv_block_forward.2} parent=19 // pred_region
        %s240 = sadd.s32 %s20, 2
        %p241 = scmp.lt.s32.totalorder %s19, 1
        %s242 = scalar_select %p241, %s19, 1
        %p243 = scmp.lt.s32.totalorder %s240, 17
        %s244 = scalar_select %p243, %s240, 17
        %s245 = smul.addr %s244, 3
        %s246 = smul.addr %s242, 54
        %s247 = sadd.s32 %s245, %s246
        %s248 = smul.addr %s247, 4
        %s249 = scalar_lea.vmem %s2, %s248
        %s250 = sadd.s32 %s20, 2
      $region32: #{conv_block_forward.2} parent=19 // pred_fallthru
        _
    $region20: #{conv_block_forward.2} parent=5 // pred_fallthru
      _
    %p251 = scmp.le.s32.totalorder 1, %s12
    %p252 = scmp.lt.s32.totalorder %s12, 33
    %p253 = pnand %p251, %p252
    %p254 = pneg %p253
    // Predicated region
    $region33: #{conv_block_forward.2} parent=5 // pred_check
      _
    $region34: #{conv_block_forward.2} parent=5 // pred_check_branch
      %256 = sbr.rel (%p253) target = $region36
    $region35: #{conv_block_forward.2} parent=5 // pred_region
      %s257 = ssub.s32 %s12, 1
      %p258 = scmp.lt.s32.totalorder %s21, 1
      %s259 = scalar_select %p258, %s21, 1
      %p260 = scmp.lt.s32.totalorder %s22, 17
      %s261 = scalar_select %p260, %s22, 17
      %s262 = smul.addr %s261, 3
      %s263 = smul.addr %s259, 54
      %s264 = sadd.s32 %s262, %s263
      %s265 = smul.addr %s264, 4
      %s266 = scalar_lea.vmem %s0, %s265
      %p267 = pneg %p52
      %p268 = pneg %p49
      %s269 = sadd.s32 %s22, 1
      %p270 = scmp.lt.s32.totalorder %s21, 1
      %s271 = scalar_select %p270, %s21, 1
      %p272 = scmp.lt.s32.totalorder %s269, 17
      %s273 = scalar_select %p272, %s269, 17
      %s274 = smul.addr %s273, 3
      %s275 = smul.addr %s271, 54
      %s276 = sadd.s32 %s274, %s275
      %s277 = smul.addr %s276, 4
      %s278 = scalar_lea.vmem %s1, %s277
      %p279 = pneg %p82
      %p280 = pneg %p79
      %s281 = sadd.s32 %s22, 2
      %p282 = scmp.lt.s32.totalorder %s21, 1
      %s283 = scalar_select %p282, %s21, 1
      %p284 = scmp.lt.s32.totalorder %s281, 17
      %s285 = scalar_select %p284, %s281, 17
      %s286 = smul.addr %s285, 3
      %s287 = smul.addr %s283, 54
      %s288 = sadd.s32 %s286, %s287
      %s289 = smul.addr %s288, 4
      %s290 = scalar_lea.vmem %s2, %s289
      %p291 = pneg %p112
      %p292 = pneg %p109
      %p293 = pneg %p133
      %p294 = pneg %p130
      %p295 = pneg %p161
      %p296 = pneg %p158
      %p297 = scmp.lt.s32.totalorder %s21, 1
      %s298 = scalar_select %p297, %s21, 1
      %p299 = scmp.lt.s32.totalorder %s22, 15
      %s300 = scalar_select %p299, %s22, 15
      %s301 = smul.addr %s300, 2
      %s302 = smul.addr %s298, 32
      %s303 = sadd.s32 %s301, %s302
      %s304 = smul.addr %s303, 4
      %s305 = scalar_lea.vmem %s4, %s304
      %p306 = pneg %p189
      %p307 = pneg %p186
      %p308 = scmp.lt.s32.totalorder %s21, 1
      %s309 = scalar_select %p308, %s21, 1
      %p310 = scmp.lt.s32.totalorder %s22, 15
      %s311 = scalar_select %p310, %s22, 15
      %s312 = smul.addr %s309, 16
      %s313 = sadd.s32 %s311, %s312
      %s314 = smul.addr %s313, 2
      %s315 = scalar_lea.vmem %s5, %s314
      %p316 = scmp.lt.s32.totalorder %s21, 1
      %s317 = scalar_select %p316, %s21, 1
      %p318 = scmp.lt.s32.totalorder %s22, 17
      %s319 = scalar_select %p318, %s22, 17
      %s320 = smul.addr %s319, 3
      %s321 = smul.addr %s317, 54
      %s322 = sadd.s32 %s320, %s321
      %s323 = smul.addr %s322, 4
      %s324 = scalar_lea.vmem %s0, %s323
      %s325 = sadd.s32 %s22, 1
      %p326 = scmp.lt.s32.totalorder %s21, 1
      %s327 = scalar_select %p326, %s21, 1
      %p328 = scmp.lt.s32.totalorder %s325, 17
      %s329 = scalar_select %p328, %s325, 17
      %s330 = smul.addr %s329, 3
      %s331 = smul.addr %s327, 54
      %s332 = sadd.s32 %s330, %s331
      %s333 = smul.addr %s332, 4
      %s334 = scalar_lea.vmem %s1, %s333
      %s335 = sadd.s32 %s22, 1
      %s336 = sadd.s32 %s22, 2
      %p337 = scmp.lt.s32.totalorder %s21, 1
      %s338 = scalar_select %p337, %s21, 1
      %p339 = scmp.lt.s32.totalorder %s336, 17
      %s340 = scalar_select %p339, %s336, 17
      %s341 = smul.addr %s340, 3
      %s342 = smul.addr %s338, 54
      %s343 = sadd.s32 %s341, %s342
      %s344 = smul.addr %s343, 4
      %s345 = scalar_lea.vmem %s2, %s344
      %s346 = sadd.s32 %s22, 2
      %p347 = scmp.lt.s32.totalorder %s21, 1
      %s348 = scalar_select %p347, %s21, 1
      %p349 = scmp.lt.s32.totalorder %s22, 15
      %s350 = scalar_select %p349, %s22, 15
      %s351 = smul.addr %s350, 2
      %s352 = smul.addr %s348, 32
      %s353 = sadd.s32 %s351, %s352
      %s354 = smul.addr %s353, 4
      %s355 = scalar_lea.vmem %s4, %s354
      %p356 = scmp.lt.s32.totalorder %s21, 1
      %s357 = scalar_select %p356, %s21, 1
      %p358 = scmp.lt.s32.totalorder %s22, 15
      %s359 = scalar_select %p358, %s22, 15
      %s360 = smul.addr %s357, 16
      %s361 = sadd.s32 %s359, %s360
      %s362 = smul.addr %s361, 2
      %s363 = scalar_lea.vmem %s5, %s362
      %v365 = vld [vmem:[%s324] sm:$0xf]
      %v366 = vld [vmem:[%s324 + $0x4] sm:$0xf]
      %v367 = vld [vmem:[%s324 + $0x8] sm:$0x1]
      %v368 = vld [vmem:[%s3] sm:$0x3]
      %s369 = scalar_lea.vmem %s3, 2
      %v370 = vld [vmem:[%s369] sm:$0x3]
      %v374 = vunpack.c.l.b16 %v365
      %v375 = vunpack.c.l.b16 %v366
      %v376 = vunpack.c.l.b16 %v367
      %v377 = vpack.c.b16 %v375, %v374
      %v378 = vpack.c.b16 %v376, %v376
      %vm379 = vsmask.f32 7424
      %v381 = vshrl.u32 %v377, 16
      %v383 = vshll.u32 %v377, 16
      %v385 = vrot.slane %v383, 1
      %v386 = vor.u32 %v381, %v385
      %v388 = vshll.u32 %v378, 16
      %v390 = vrot.slane %v388, 1
      %v391 = vsel %vm379, %v386, %v390
      %vm392 = vcmask 31744
      %v394 = vsel %vm392, %v391, 0
      %vm396 = vcmask 1041408
      %v398 = vsel %vm396, %v370, 0
      %400 = vmatprep.subr.bf16.mxu0 0
      %401 = vmatpush1.bf16.msra.mxu0 0
      %402 = vmatprep.subr.bf16.mxu0 0
      %403 = vmatpush1.bf16.msra.mxu0 0
      %404 = vmatprep.subr.bf16.mxu0 0
      %405 = vmatpush1.bf16.msra.mxu0 0
      %406 = vmatprep.subr.bf16.mxu0 0
      %407 = vmatpush1.bf16.msra.mxu0 0
      %408 = vmatprep.subr.bf16.mxu0 0
      %409 = vmatpush1.bf16.msra.mxu0 0
      %410 = vmatprep.subr.bf16.mxu0 0
      %411 = vmatpush1.bf16.msra.mxu0 0
      %412 = vmatprep.subr.bf16.mxu0 0
      %413 = vmatpush1.bf16.msra.mxu0 0
      %414 = vmatprep.subr.bf16.mxu0 0
      %415 = vmatpush1.bf16.msra.mxu0 %v398
      %416 = vmatprep.subr.bf16.mxu0 0
      %417 = vmatpush2.bf16.msra.mxu0 0
      %418 = vmatprep.subr.bf16.mxu0 0
      %419 = vmatpush2.bf16.msra.mxu0 0
      %420 = vmatprep.subr.bf16.mxu0 0
      %421 = vmatpush2.bf16.msra.mxu0 0
      %422 = vmatprep.subr.bf16.mxu0 0
      %423 = vmatpush2.bf16.msra.mxu0 0
      %424 = vmatprep.subr.bf16.mxu0 0
      %425 = vmatpush2.bf16.msra.mxu0 0
      %426 = vmatprep.subr.bf16.mxu0 0
      %427 = vmatpush2.bf16.msra.mxu0 0
      %428 = vmatprep.subr.bf16.mxu0 0
      %429 = vmatpush2.bf16.msra.mxu0 0
      %430 = vmatprep.subr.bf16.mxu0 0
      %431 = vmatpush2.bf16.msra.mxu0 0
      %432 = vmatprep.mubr.bf16.mxu0 0
      %433 = vmatmul.mubr.bf16.gmra.mxu0 %v394
      %v434 = vpop.f32.mrf.mxu0
      %v435 = vadd.f32 0.0, %v434
      %v436 = vpop.f32.mrf.mxu0
      %v437 = vpop.f32.mrf.mxu0
      %v438 = vadd.f32 0.0, %v437
      %v439 = vpop.f32.mrf.mxu0
      %440 = vdwg.mxu0
      %v441 = vsel %vm392, %v377, 0
      %v444 = vsel %vm396, %v368, 0
      %446 = vmatprep.subr.bf16.mxu0 0
      %447 = vmatpush1.bf16.msra.mxu0 0
      %448 = vmatprep.subr.bf16.mxu0 0
      %449 = vmatpush1.bf16.msra.mxu0 0
      %450 = vmatprep.subr.bf16.mxu0 0
      %451 = vmatpush1.bf16.msra.mxu0 0
      %452 = vmatprep.subr.bf16.mxu0 0
      %453 = vmatpush1.bf16.msra.mxu0 0
      %454 = vmatprep.subr.bf16.mxu0 0
      %455 = vmatpush1.bf16.msra.mxu0 0
      %456 = vmatprep.subr.bf16.mxu0 0
      %457 = vmatpush1.bf16.msra.mxu0 0
      %458 = vmatprep.subr.bf16.mxu0 0
      %459 = vmatpush1.bf16.msra.mxu0 0
      %460 = vmatprep.subr.bf16.mxu0 0
      %461 = vmatpush1.bf16.msra.mxu0 %v444
      %462 = vmatprep.subr.bf16.mxu0 0
      %463 = vmatpush2.bf16.msra.mxu0 0
      %464 = vmatprep.subr.bf16.mxu0 0
      %465 = vmatpush2.bf16.msra.mxu0 0
      %466 = vmatprep.subr.bf16.mxu0 0
      %467 = vmatpush2.bf16.msra.mxu0 0
      %468 = vmatprep.subr.bf16.mxu0 0
      %469 = vmatpush2.bf16.msra.mxu0 0
      %470 = vmatprep.subr.bf16.mxu0 0
      %471 = vmatpush2.bf16.msra.mxu0 0
      %472 = vmatprep.subr.bf16.mxu0 0
      %473 = vmatpush2.bf16.msra.mxu0 0
      %474 = vmatprep.subr.bf16.mxu0 0
      %475 = vmatpush2.bf16.msra.mxu0 0
      %476 = vmatprep.subr.bf16.mxu0 0
      %477 = vmatpush2.bf16.msra.mxu0 0
      %478 = vmatprep.mubr.bf16.mxu0 0
      %479 = vmatmul.mubr.bf16.gmra.mxu0 %v441
      %v480 = vpop.f32.mrf.mxu0
      %v481 = vadd.f32 %v435, %v480
      %v482 = vpop.f32.mrf.mxu0
      %v483 = vpop.f32.mrf.mxu0
      %v484 = vadd.f32 %v438, %v483
      %v485 = vpop.f32.mrf.mxu0
      %486 = vdwg.mxu0
      %s487 = scalar_lea.vmem %s3, 4
      %v488 = vld [vmem:[%s487] sm:$0x3]
      %vm489 = vcmask 1046528
      %v490 = vrot.slane %v377, 1
      %v491 = vrot.slane %v378, 1
      %v492 = vsel %vm489, %v490, %v491
      %v494 = vsel %vm392, %v492, 0
      %v497 = vsel %vm396, %v488, 0
      %499 = vmatprep.subr.bf16.mxu0 0
      %500 = vmatpush1.bf16.msra.mxu0 0
      %501 = vmatprep.subr.bf16.mxu0 0
      %502 = vmatpush1.bf16.msra.mxu0 0
      %503 = vmatprep.subr.bf16.mxu0 0
      %504 = vmatpush1.bf16.msra.mxu0 0
      %505 = vmatprep.subr.bf16.mxu0 0
      %506 = vmatpush1.bf16.msra.mxu0 0
      %507 = vmatprep.subr.bf16.mxu0 0
      %508 = vmatpush1.bf16.msra.mxu0 0
      %509 = vmatprep.subr.bf16.mxu0 0
      %510 = vmatpush1.bf16.msra.mxu0 0
      %511 = vmatprep.subr.bf16.mxu0 0
      %512 = vmatpush1.bf16.msra.mxu0 0
      %513 = vmatprep.subr.bf16.mxu0 0
      %514 = vmatpush1.bf16.msra.mxu0 %v497
      %515 = vmatprep.subr.bf16.mxu0 0
      %516 = vmatpush2.bf16.msra.mxu0 0
      %517 = vmatprep.subr.bf16.mxu0 0
      %518 = vmatpush2.bf16.msra.mxu0 0
      %519 = vmatprep.subr.bf16.mxu0 0
      %520 = vmatpush2.bf16.msra.mxu0 0
      %521 = vmatprep.subr.bf16.mxu0 0
      %522 = vmatpush2.bf16.msra.mxu0 0
      %523 = vmatprep.subr.bf16.mxu0 0
      %524 = vmatpush2.bf16.msra.mxu0 0
      %525 = vmatprep.subr.bf16.mxu0 0
      %526 = vmatpush2.bf16.msra.mxu0 0
      %527 = vmatprep.subr.bf16.mxu0 0
      %528 = vmatpush2.bf16.msra.mxu0 0
      %529 = vmatprep.subr.bf16.mxu0 0
      %530 = vmatpush2.bf16.msra.mxu0 0
      %531 = vmatprep.mubr.bf16.mxu0 0
      %532 = vmatmul.mubr.bf16.gmra.mxu0 %v494
      %v533 = vpop.f32.mrf.mxu0
      %v534 = vadd.f32 0.0, %v533
      %v535 = vpop.f32.mrf.mxu0
      %v536 = vpop.f32.mrf.mxu0
      %v537 = vadd.f32 0.0, %v536
      %v538 = vpop.f32.mrf.mxu0
      %539 = vdwg.mxu0
      %v540 = vadd.f32 %v481, %v534
      %v541 = vadd.f32 %v484, %v537
      %v542 = vld [vmem:[%s334] sm:$0xf]
      %v543 = vld [vmem:[%s334 + $0x4] sm:$0xf]
      %v544 = vld [vmem:[%s334 + $0x8] sm:$0x1]
      %s545 = scalar_lea.vmem %s3, 6
      %v546 = vld [vmem:[%s545] sm:$0x3]
      %v549 = vunpack.c.l.b16 %v542
      %v550 = vunpack.c.l.b16 %v543
      %v551 = vpack.c.b16 %v550, %v549
      %v553 = vsel %vm392, %v551, 0
      %v556 = vsel %vm396, %v546, 0
      %558 = vmatprep.subr.bf16.mxu0 0
      %559 = vmatpush1.bf16.msra.mxu0 0
      %560 = vmatprep.subr.bf16.mxu0 0
      %561 = vmatpush1.bf16.msra.mxu0 0
      %562 = vmatprep.subr.bf16.mxu0 0
      %563 = vmatpush1.bf16.msra.mxu0 0
      %564 = vmatprep.subr.bf16.mxu0 0
      %565 = vmatpush1.bf16.msra.mxu0 0
      %566 = vmatprep.subr.bf16.mxu0 0
      %567 = vmatpush1.bf16.msra.mxu0 0
      %568 = vmatprep.subr.bf16.mxu0 0
      %569 = vmatpush1.bf16.msra.mxu0 0
      %570 = vmatprep.subr.bf16.mxu0 0
      %571 = vmatpush1.bf16.msra.mxu0 0
      %572 = vmatprep.subr.bf16.mxu0 0
      %573 = vmatpush1.bf16.msra.mxu0 %v556
      %574 = vmatprep.subr.bf16.mxu0 0
      %575 = vmatpush2.bf16.msra.mxu0 0
      %576 = vmatprep.subr.bf16.mxu0 0
      %577 = vmatpush2.bf16.msra.mxu0 0
      %578 = vmatprep.subr.bf16.mxu0 0
      %579 = vmatpush2.bf16.msra.mxu0 0
      %580 = vmatprep.subr.bf16.mxu0 0
      %581 = vmatpush2.bf16.msra.mxu0 0
      %582 = vmatprep.subr.bf16.mxu0 0
      %583 = vmatpush2.bf16.msra.mxu0 0
      %584 = vmatprep.subr.bf16.mxu0 0
      %585 = vmatpush2.bf16.msra.mxu0 0
      %586 = vmatprep.subr.bf16.mxu0 0
      %587 = vmatpush2.bf16.msra.mxu0 0
      %588 = vmatprep.subr.bf16.mxu0 0
      %589 = vmatpush2.bf16.msra.mxu0 0
      %590 = vmatprep.mubr.bf16.mxu0 0
      %591 = vmatmul.mubr.bf16.gmra.mxu0 %v553
      %v592 = vpop.f32.mrf.mxu0
      %v593 = vadd.f32 0.0, %v592
      %v594 = vpop.f32.mrf.mxu0
      %v595 = vpop.f32.mrf.mxu0
      %v596 = vadd.f32 0.0, %v595
      %v597 = vpop.f32.mrf.mxu0
      %598 = vdwg.mxu0
      %v599 = vadd.f32 %v540, %v593
      %v600 = vadd.f32 %v541, %v596
      %s601 = scalar_lea.vmem %s3, 8
      %v602 = vld [vmem:[%s601] sm:$0x3]
      %v604 = vunpack.c.l.b16 %v544
      %v605 = vpack.c.b16 %v604, %v604
      %v606 = vshrl.u32 %v551, 16
      %v608 = vshll.u32 %v551, 16
      %v610 = vrot.slane %v608, 1
      %v611 = vor.u32 %v606, %v610
      %v613 = vshll.u32 %v605, 16
      %v615 = vrot.slane %v613, 1
      %v616 = vsel %vm379, %v611, %v615
      %v618 = vsel %vm392, %v616, 0
      %v621 = vsel %vm396, %v602, 0
      %623 = vmatprep.subr.bf16.mxu0 0
      %624 = vmatpush1.bf16.msra.mxu0 0
      %625 = vmatprep.subr.bf16.mxu0 0
      %626 = vmatpush1.bf16.msra.mxu0 0
      %627 = vmatprep.subr.bf16.mxu0 0
      %628 = vmatpush1.bf16.msra.mxu0 0
      %629 = vmatprep.subr.bf16.mxu0 0
      %630 = vmatpush1.bf16.msra.mxu0 0
      %631 = vmatprep.subr.bf16.mxu0 0
      %632 = vmatpush1.bf16.msra.mxu0 0
      %633 = vmatprep.subr.bf16.mxu0 0
      %634 = vmatpush1.bf16.msra.mxu0 0
      %635 = vmatprep.subr.bf16.mxu0 0
      %636 = vmatpush1.bf16.msra.mxu0 0
      %637 = vmatprep.subr.bf16.mxu0 0
      %638 = vmatpush1.bf16.msra.mxu0 %v621
      %639 = vmatprep.subr.bf16.mxu0 0
      %640 = vmatpush2.bf16.msra.mxu0 0
      %641 = vmatprep.subr.bf16.mxu0 0
      %642 = vmatpush2.bf16.msra.mxu0 0
      %643 = vmatprep.subr.bf16.mxu0 0
      %644 = vmatpush2.bf16.msra.mxu0 0
      %645 = vmatprep.subr.bf16.mxu0 0
      %646 = vmatpush2.bf16.msra.mxu0 0
      %647 = vmatprep.subr.bf16.mxu0 0
      %648 = vmatpush2.bf16.msra.mxu0 0
      %649 = vmatprep.subr.bf16.mxu0 0
      %650 = vmatpush2.bf16.msra.mxu0 0
      %651 = vmatprep.subr.bf16.mxu0 0
      %652 = vmatpush2.bf16.msra.mxu0 0
      %653 = vmatprep.subr.bf16.mxu0 0
      %654 = vmatpush2.bf16.msra.mxu0 0
      %655 = vmatprep.mubr.bf16.mxu0 0
      %656 = vmatmul.mubr.bf16.gmra.mxu0 %v618
      %v657 = vpop.f32.mrf.mxu0
      %v658 = vadd.f32 0.0, %v657
      %v659 = vpop.f32.mrf.mxu0
      %v660 = vpop.f32.mrf.mxu0
      %v661 = vadd.f32 0.0, %v660
      %v662 = vpop.f32.mrf.mxu0
      %663 = vdwg.mxu0
      %v664 = vadd.f32 %v599, %v658
      %v665 = vadd.f32 %v600, %v661
      %s666 = scalar_lea.vmem %s3, 10
      %v667 = vld [vmem:[%s666] sm:$0x3]
      %v668 = vrot.slane %v551, 1
      %v669 = vrot.slane %v605, 1
      %v670 = vsel %vm489, %v668, %v669
      %v672 = vsel %vm392, %v670, 0
      %v675 = vsel %vm396, %v667, 0
      %677 = vmatprep.subr.bf16.mxu0 0
      %678 = vmatpush1.bf16.msra.mxu0 0
      %679 = vmatprep.subr.bf16.mxu0 0
      %680 = vmatpush1.bf16.msra.mxu0 0
      %681 = vmatprep.subr.bf16.mxu0 0
      %682 = vmatpush1.bf16.msra.mxu0 0
      %683 = vmatprep.subr.bf16.mxu0 0
      %684 = vmatpush1.bf16.msra.mxu0 0
      %685 = vmatprep.subr.bf16.mxu0 0
      %686 = vmatpush1.bf16.msra.mxu0 0
      %687 = vmatprep.subr.bf16.mxu0 0
      %688 = vmatpush1.bf16.msra.mxu0 0
      %689 = vmatprep.subr.bf16.mxu0 0
      %690 = vmatpush1.bf16.msra.mxu0 0
      %691 = vmatprep.subr.bf16.mxu0 0
      %692 = vmatpush1.bf16.msra.mxu0 %v675
      %693 = vmatprep.subr.bf16.mxu0 0
      %694 = vmatpush2.bf16.msra.mxu0 0
      %695 = vmatprep.subr.bf16.mxu0 0
      %696 = vmatpush2.bf16.msra.mxu0 0
      %697 = vmatprep.subr.bf16.mxu0 0
      %698 = vmatpush2.bf16.msra.mxu0 0
      %699 = vmatprep.subr.bf16.mxu0 0
      %700 = vmatpush2.bf16.msra.mxu0 0
      %701 = vmatprep.subr.bf16.mxu0 0
      %702 = vmatpush2.bf16.msra.mxu0 0
      %703 = vmatprep.subr.bf16.mxu0 0
      %704 = vmatpush2.bf16.msra.mxu0 0
      %705 = vmatprep.subr.bf16.mxu0 0
      %706 = vmatpush2.bf16.msra.mxu0 0
      %707 = vmatprep.subr.bf16.mxu0 0
      %708 = vmatpush2.bf16.msra.mxu0 0
      %709 = vmatprep.mubr.bf16.mxu0 0
      %710 = vmatmul.mubr.bf16.gmra.mxu0 %v672
      %v711 = vpop.f32.mrf.mxu0
      %v712 = vadd.f32 0.0, %v711
      %v713 = vpop.f32.mrf.mxu0
      %v714 = vpop.f32.mrf.mxu0
      %v715 = vadd.f32 0.0, %v714
      %v716 = vpop.f32.mrf.mxu0
      %717 = vdwg.mxu0
      %v718 = vadd.f32 %v664, %v712
      %v719 = vadd.f32 %v665, %v715
      %v720 = vld [vmem:[%s345] sm:$0xf]
      %v721 = vld [vmem:[%s345 + $0x4] sm:$0xf]
      %v722 = vld [vmem:[%s345 + $0x8] sm:$0x1]
      %s723 = scalar_lea.vmem %s3, 12
      %v724 = vld [vmem:[%s723] sm:$0x3]
      %v727 = vunpack.c.l.b16 %v720
      %v728 = vunpack.c.l.b16 %v721
      %v729 = vpack.c.b16 %v728, %v727
      %v731 = vsel %vm392, %v729, 0
      %v734 = vsel %vm396, %v724, 0
      %736 = vmatprep.subr.bf16.mxu0 0
      %737 = vmatpush1.bf16.msra.mxu0 0
      %738 = vmatprep.subr.bf16.mxu0 0
      %739 = vmatpush1.bf16.msra.mxu0 0
      %740 = vmatprep.subr.bf16.mxu0 0
      %741 = vmatpush1.bf16.msra.mxu0 0
      %742 = vmatprep.subr.bf16.mxu0 0
      %743 = vmatpush1.bf16.msra.mxu0 0
      %744 = vmatprep.subr.bf16.mxu0 0
      %745 = vmatpush1.bf16.msra.mxu0 0
      %746 = vmatprep.subr.bf16.mxu0 0
      %747 = vmatpush1.bf16.msra.mxu0 0
      %748 = vmatprep.subr.bf16.mxu0 0
      %749 = vmatpush1.bf16.msra.mxu0 0
      %750 = vmatprep.subr.bf16.mxu0 0
      %751 = vmatpush1.bf16.msra.mxu0 %v734
      %752 = vmatprep.subr.bf16.mxu0 0
      %753 = vmatpush2.bf16.msra.mxu0 0
      %754 = vmatprep.subr.bf16.mxu0 0
      %755 = vmatpush2.bf16.msra.mxu0 0
      %756 = vmatprep.subr.bf16.mxu0 0
      %757 = vmatpush2.bf16.msra.mxu0 0
      %758 = vmatprep.subr.bf16.mxu0 0
      %759 = vmatpush2.bf16.msra.mxu0 0
      %760 = vmatprep.subr.bf16.mxu0 0
      %761 = vmatpush2.bf16.msra.mxu0 0
      %762 = vmatprep.subr.bf16.mxu0 0
      %763 = vmatpush2.bf16.msra.mxu0 0
      %764 = vmatprep.subr.bf16.mxu0 0
      %765 = vmatpush2.bf16.msra.mxu0 0
      %766 = vmatprep.subr.bf16.mxu0 0
      %767 = vmatpush2.bf16.msra.mxu0 0
      %768 = vmatprep.mubr.bf16.mxu0 0
      %769 = vmatmul.mubr.bf16.gmra.mxu0 %v731
      %v770 = vpop.f32.mrf.mxu0
      %v771 = vadd.f32 0.0, %v770
      %v772 = vpop.f32.mrf.mxu0
      %v773 = vpop.f32.mrf.mxu0
      %v774 = vadd.f32 0.0, %v773
      %v775 = vpop.f32.mrf.mxu0
      %776 = vdwg.mxu0
      %v777 = vadd.f32 %v718, %v771
      %v778 = vadd.f32 %v719, %v774
      %s779 = scalar_lea.vmem %s3, 14
      %v780 = vld [vmem:[%s779] sm:$0x3]
      %v782 = vunpack.c.l.b16 %v722
      %v783 = vpack.c.b16 %v782, %v782
      %v784 = vshrl.u32 %v729, 16
      %v786 = vshll.u32 %v729, 16
      %v788 = vrot.slane %v786, 1
      %v789 = vor.u32 %v784, %v788
      %v791 = vshll.u32 %v783, 16
      %v793 = vrot.slane %v791, 1
      %v794 = vsel %vm379, %v789, %v793
      %v796 = vsel %vm392, %v794, 0
      %v799 = vsel %vm396, %v780, 0
      %801 = vmatprep.subr.bf16.mxu0 0
      %802 = vmatpush1.bf16.msra.mxu0 0
      %803 = vmatprep.subr.bf16.mxu0 0
      %804 = vmatpush1.bf16.msra.mxu0 0
      %805 = vmatprep.subr.bf16.mxu0 0
      %806 = vmatpush1.bf16.msra.mxu0 0
      %807 = vmatprep.subr.bf16.mxu0 0
      %808 = vmatpush1.bf16.msra.mxu0 0
      %809 = vmatprep.subr.bf16.mxu0 0
      %810 = vmatpush1.bf16.msra.mxu0 0
      %811 = vmatprep.subr.bf16.mxu0 0
      %812 = vmatpush1.bf16.msra.mxu0 0
      %813 = vmatprep.subr.bf16.mxu0 0
      %814 = vmatpush1.bf16.msra.mxu0 0
      %815 = vmatprep.subr.bf16.mxu0 0
      %816 = vmatpush1.bf16.msra.mxu0 %v799
      %817 = vmatprep.subr.bf16.mxu0 0
      %818 = vmatpush2.bf16.msra.mxu0 0
      %819 = vmatprep.subr.bf16.mxu0 0
      %820 = vmatpush2.bf16.msra.mxu0 0
      %821 = vmatprep.subr.bf16.mxu0 0
      %822 = vmatpush2.bf16.msra.mxu0 0
      %823 = vmatprep.subr.bf16.mxu0 0
      %824 = vmatpush2.bf16.msra.mxu0 0
      %825 = vmatprep.subr.bf16.mxu0 0
      %826 = vmatpush2.bf16.msra.mxu0 0
      %827 = vmatprep.subr.bf16.mxu0 0
      %828 = vmatpush2.bf16.msra.mxu0 0
      %829 = vmatprep.subr.bf16.mxu0 0
      %830 = vmatpush2.bf16.msra.mxu0 0
      %831 = vmatprep.subr.bf16.mxu0 0
      %832 = vmatpush2.bf16.msra.mxu0 0
      %833 = vmatprep.mubr.bf16.mxu0 0
      %834 = vmatmul.mubr.bf16.gmra.mxu0 %v796
      %v835 = vpop.f32.mrf.mxu0
      %v836 = vadd.f32 0.0, %v835
      %v837 = vpop.f32.mrf.mxu0
      %v838 = vpop.f32.mrf.mxu0
      %v839 = vadd.f32 0.0, %v838
      %v840 = vpop.f32.mrf.mxu0
      %841 = vdwg.mxu0
      %v842 = vadd.f32 %v777, %v836
      %v843 = vadd.f32 %v778, %v839
      %s844 = scalar_lea.vmem %s3, 16
      %v845 = vld [vmem:[%s844] sm:$0x3]
      %v846 = vrot.slane %v729, 1
      %v847 = vrot.slane %v783, 1
      %v848 = vsel %vm489, %v846, %v847
      %v850 = vsel %vm392, %v848, 0
      %v853 = vsel %vm396, %v845, 0
      %855 = vmatprep.subr.bf16.mxu0 0
      %856 = vmatpush1.bf16.msra.mxu0 0
      %857 = vmatprep.subr.bf16.mxu0 0
      %858 = vmatpush1.bf16.msra.mxu0 0
      %859 = vmatprep.subr.bf16.mxu0 0
      %860 = vmatpush1.bf16.msra.mxu0 0
      %861 = vmatprep.subr.bf16.mxu0 0
      %862 = vmatpush1.bf16.msra.mxu0 0
      %863 = vmatprep.subr.bf16.mxu0 0
      %864 = vmatpush1.bf16.msra.mxu0 0
      %865 = vmatprep.subr.bf16.mxu0 0
      %866 = vmatpush1.bf16.msra.mxu0 0
      %867 = vmatprep.subr.bf16.mxu0 0
      %868 = vmatpush1.bf16.msra.mxu0 0
      %869 = vmatprep.subr.bf16.mxu0 0
      %870 = vmatpush1.bf16.msra.mxu0 %v853
      %871 = vmatprep.subr.bf16.mxu0 0
      %872 = vmatpush2.bf16.msra.mxu0 0
      %873 = vmatprep.subr.bf16.mxu0 0
      %874 = vmatpush2.bf16.msra.mxu0 0
      %875 = vmatprep.subr.bf16.mxu0 0
      %876 = vmatpush2.bf16.msra.mxu0 0
      %877 = vmatprep.subr.bf16.mxu0 0
      %878 = vmatpush2.bf16.msra.mxu0 0
      %879 = vmatprep.subr.bf16.mxu0 0
      %880 = vmatpush2.bf16.msra.mxu0 0
      %881 = vmatprep.subr.bf16.mxu0 0
      %882 = vmatpush2.bf16.msra.mxu0 0
      %883 = vmatprep.subr.bf16.mxu0 0
      %884 = vmatpush2.bf16.msra.mxu0 0
      %885 = vmatprep.subr.bf16.mxu0 0
      %886 = vmatpush2.bf16.msra.mxu0 0
      %887 = vmatprep.mubr.bf16.mxu0 0
      %888 = vmatmul.mubr.bf16.gmra.mxu0 %v850
      %v889 = vpop.f32.mrf.mxu0
      %v890 = vadd.f32 0.0, %v889
      %v891 = vpop.f32.mrf.mxu0
      %v892 = vpop.f32.mrf.mxu0
      %v893 = vadd.f32 0.0, %v892
      %v894 = vpop.f32.mrf.mxu0
      %895 = vdwg.mxu0
      %v896 = vadd.f32 %v842, %v890
      %v897 = vadd.f32 %v843, %v893
      %v898 = vpack.c.bf16 %v897, %v896
      %v900 = vunpack.c.l.b16 %v898
      %v901 = vunpack.c.h.b16 %v898
      %v902 = vpack.c.b16 %v900, %v900
      %v903 = vpack.c.b16 %v901, %v901
      %vm906 = vcmask 60416
      %907 = vst.msk [vmem:[%s355] sm:$0xf] %vm906, %v902
      %908 = vst.msk [vmem:[%s355 + $0x4] sm:$0xf] %vm906, %v903
      %vm909 = vcmask 64512
      %v910 = vsel %vm909, %v896, 0.0
      %v911 = vsel %vm909, %v897, 0.0
      %v912 = vadd.f32 %v910, %v911
      %v913 = vrot.slane %v912, 4
      %v914 = vadd.f32 %v912, %v913
      %v915 = vrot.slane %v914, 2
      %v916 = vadd.f32 %v914, %v915
      %v917 = vrot.slane %v916, 1
      %v918 = vadd.f32 %v916, %v917
      %vm919 = vcmask 57344
      %920 = vst.msk [vmem:[%s363] sm:$0x1] %vm919, %v918
      %v921 = vmul.f32 %v896, %v896
      %v922 = vmul.f32 %v897, %v897
      %v923 = vsel %vm909, %v921, 0.0
      %v924 = vsel %vm909, %v922, 0.0
      %v925 = vadd.f32 %v923, %v924
      %v926 = vrot.slane %v925, 4
      %v927 = vadd.f32 %v925, %v926
      %v928 = vrot.slane %v927, 2
      %v929 = vadd.f32 %v927, %v928
      %v930 = vrot.slane %v929, 1
      %v931 = vadd.f32 %v929, %v930
      %932 = vst.msk [vmem:[%s363 + $0x1] sm:$0x1] %vm919, %v931
      %p933 = scmp.lt.s32.totalorder %s21, 1
      %s934 = scalar_select %p933, %s21, 1
      %p935 = scmp.lt.s32.totalorder %s22, 15
      %s936 = scalar_select %p935, %s22, 15
      %s937 = smul.addr %s936, 2
      %s938 = smul.addr %s934, 32
      %s939 = sadd.s32 %s937, %s938
      %s940 = smul.addr %s939, 4
      %s941 = scalar_lea.vmem %s4, %s940
      %p942 = scmp.lt.s32.totalorder %s21, 1
      %s943 = scalar_select %p942, %s21, 1
      %p944 = scmp.lt.s32.totalorder %s22, 15
      %s945 = scalar_select %p944, %s22, 15
      %s946 = smul.addr %s943, 16
      %s947 = sadd.s32 %s945, %s946
      %s948 = smul.addr %s947, 2
      %s949 = scalar_lea.vmem %s5, %s948
      // Predicated region
      $region37: #{conv_block_forward.2} parent=35 // pred_check
        %p950 = pneg %p158
      $region38: #{conv_block_forward.2} parent=35 // pred_check_branch
        %952 = sbr.rel (%p950) target = $region40
      $region39: #{conv_block_forward.2} parent=35 // pred_region
        _
      $region40: #{conv_block_forward.2} parent=35 // pred_fallthru
        _
      // Predicated region
      $region41: #{conv_block_forward.2} parent=35 // pred_check
        %p953 = pneg %p186
      $region42: #{conv_block_forward.2} parent=35 // pred_check_branch
        %955 = sbr.rel (%p953) target = $region44
      $region43: #{conv_block_forward.2} parent=35 // pred_region
        _
      $region44: #{conv_block_forward.2} parent=35 // pred_fallthru
        _
    $region36: #{conv_block_forward.2} parent=5 // pred_fallthru
      _
    %p956 = scmp.le.s32.totalorder 2, %s12
    // Predicated region
    $region45: #{conv_block_forward.2} parent=5 // pred_check
      %p957 = pneg %p956
    $region46: #{conv_block_forward.2} parent=5 // pred_check_branch
      %959 = sbr.rel (%p957) target = $region48
    $region47: #{conv_block_forward.2} parent=5 // pred_region
      %s960 = ssub.s32 %s12, 2
      // Predicated region
      $region49: #{conv_block_forward.2} parent=47 // pred_check
        %p961 = pneg %p164
      $region50: #{conv_block_forward.2} parent=47 // pred_check_branch
        %963 = sbr.rel (%p961) target = $region52
      $region51: #{conv_block_forward.2} parent=47 // pred_region
        %p964 = scmp.lt.s32.totalorder %s23, 1
        %s965 = scalar_select %p964, %s23, 1
        %p966 = scmp.lt.s32.totalorder %s24, 15
        %s967 = scalar_select %p966, %s24, 15
        %s968 = smul.addr %s967, 2
        %s969 = smul.addr %s965, 32
        %s970 = sadd.s32 %s968, %s969
        %s971 = smul.addr %s970, 4
        %s972 = scalar_lea.vmem %s4, %s971
      $region52: #{conv_block_forward.2} parent=47 // pred_fallthru
        _
      // Predicated region
      $region53: #{conv_block_forward.2} parent=47 // pred_check
        %p973 = pneg %p192
      $region54: #{conv_block_forward.2} parent=47 // pred_check_branch
        %975 = sbr.rel (%p973) target = $region56
      $region55: #{conv_block_forward.2} parent=47 // pred_region
        %p976 = scmp.lt.s32.totalorder %s23, 1
        %s977 = scalar_select %p976, %s23, 1
        %p978 = scmp.lt.s32.totalorder %s24, 15
        %s979 = scalar_select %p978, %s24, 15
        %s980 = smul.addr %s977, 16
        %s981 = sadd.s32 %s979, %s980
        %s982 = smul.addr %s981, 2
        %s983 = scalar_lea.vmem %s5, %s982
      $region56: #{conv_block_forward.2} parent=47 // pred_fallthru
        _
    $region48: #{conv_block_forward.2} parent=5 // pred_fallthru
      _
  $region6: #{conv_block_forward.2} parent=0 // loop_footer
    %s16 = sadd.s32 1, %s12
  $region7: #{conv_block_forward.2} parent=0 // loop_footer_branch
    %11 = sbr.rel target = $region3
  $region8: #{conv_block_forward.2} parent=0 // loop_exit
    _

</llo_original>
